<compile_context>
chip_gen: v5e
topology: v5e:2x2
jax: 0.10.0
libtpu: 0.0.40
codegen_flags: <defaults>
</compile_context>

<pallas_src>
import functools

import jax
import jax.numpy as jnp
import numpy as np
from jax.experimental import pallas as pl
from jax.experimental.pallas import tpu as pltpu

# ----------------------------- configuration --------------------------------
MAX_POOL = True          # corresponds to args.max_pool
KERNEL_SIZE = 3
PADDING = 1
OUT_FEATURES = 4         # conv out channels
NUM_CLASSES = 2          # fc output dim
BATCH = 2
IN_CHANNELS = 3          # fixed by the module (Conv2d(3, ...))
H, W = 16, 16            # small spatial size (original model uses 144x176)
BN_EPS = 1e-5
LANES = 128              # lane-dense logits row width


# ----------------------------- Pallas kernel ---------------------------------
def fused_net_kernel(x_ref, wconv_ref, scale_ref, shift_ref, wfc_ref, fcb_ref,
                     o_ref, xpad_ref, *, ksize, do_pool):
    """Fused conv2d + folded-BN + ReLU (+ 2x2 maxpool) + flatten + FC, one sample.

    x_ref:     (1, Cin, H, W)       NCHW input tile, bf16 (W in lanes)
    wconv_ref: (Cout*Cin*KH*KW,)    SMEM, OIHW-flattened conv weight (f32 scalars)
    scale_ref: (Cout,)              SMEM, folded BN scale
    shift_ref: (Cout,)              SMEM, folded BN shift (incl. conv bias)
    wfc_ref:   (C, Cout, Hs, Ws)    VMEM, fc weight scattered onto the "spread" grid
    fcb_ref:   (C,)                 SMEM, fc bias
    o_ref:     (1, 1, LANES)        lane-dense logits row for this sample
    xpad_ref:  (Cin, Hp, Wp)        VMEM scratch: zero-padded image (f32)
    """
    _, cin, hin, win = x_ref.shape
    _, hp, wp = xpad_ref.shape
    n_classes, cout, hs, ws = wfc_ref.shape
    ph = (hp - hin) // 2
    pw = (wp - win) // 2
    hc = hp - ksize + 1
    wc = wp - ksize + 1

    # --- zero-pad the input inside VMEM (zeroed every step: scratch is per-core) ---
    xpad_ref[...] = jnp.zeros(xpad_ref.shape, xpad_ref.dtype)
    xpad_ref[:, ph:ph + hin, pw:pw + win] = x_ref[0].astype(xpad_ref.dtype)

    # --- conv: Cin*KH*KW broadcast-scalar VPU FMAs per output channel, f32 accum ---
    acc = [jnp.zeros((hc, wc), jnp.float32) for _ in range(cout)]
    for ci in range(cin):
        for kh in range(ksize):
            for kw in range(ksize):
                patch = xpad_ref[ci, kh:kh + hc, kw:kw + wc]      # (hc, wc), f32
                for co in range(cout):
                    widx = ((co * cin + ci) * ksize + kh) * ksize + kw
                    acc[co] = acc[co] + wconv_ref[widx] * patch

    # --- folded BN + ReLU, 2x2 max-pool (spread form), FC partial sums ---
    logits = [fcb_ref[c] for c in range(n_classes)]
    for co in range(cout):
        y = jnp.maximum(acc[co] * scale_ref[co] + shift_ref[co], 0.0)   # (hc, wc)
        if do_pool:
            # pairwise maxima via shifted slices; pooled value of window (i, j)
            # lands at p[2i, 2j]; other positions hold finite "garbage" that is
            # multiplied by the zeros pre-scattered into wfc_ref on the host.
            t = jnp.maximum(y[:, :wc - 1], y[:, 1:])      # (hc, wc-1)
            p = jnp.maximum(t[:hc - 1, :], t[1:, :])      # (hc-1, wc-1) == (hs, ws)
        else:
            p = y                                         # (hc, wc) == (hs, ws)
        for c in range(n_classes):
            logits[c] = logits[c] + jnp.sum(wfc_ref[c, co] * p)

    # --- lane-dense logits row (classes padded to 128 lanes) ---
    lane = jax.lax.broadcasted_iota(jnp.int32, o_ref.shape, len(o_ref.shape) - 1)
    row = jnp.zeros(o_ref.shape, jnp.float32)
    for c in range(n_classes):
        row = jnp.where(lane == c, logits[c], row)
    o_ref[...] = row.astype(o_ref.dtype)


# ------------------------------- wrapper --------------------------------------
@jax.jit
def one_conv_layer_net(x_nchw, params):
    """Forward pass matching OneConvLayerNet.forward (eval-mode BatchNorm)."""
    conv_w = params["conv_w"]          # (Cout, Cin, KH, KW)  OIHW
    conv_b = params["conv_b"]          # (Cout,)
    gamma = params["bn_gamma"]
    beta = params["bn_beta"]
    run_mean = params["bn_mean"]
    run_var = params["bn_var"]
    fc_w = params["fc_w"]              # (NUM_CLASSES, F), NCHW flatten order
    fc_b = params["fc_b"]              # (NUM_CLASSES,)

    N, Cin, Hin, Win = x_nchw.shape
    Cout, _, KH, KW = conv_w.shape
    n_classes = fc_w.shape[0]
    Hp, Wp = Hin + 2 * PADDING, Win + 2 * PADDING
    Hc, Wc = Hp - KH + 1, Wp - KW + 1
    if MAX_POOL:
        assert Hc % 2 == 0 and Wc % 2 == 0, "2x2 pool needs even conv output"
        Hh, Wh = Hc // 2, Wc // 2
        Hs, Ws = Hc - 1, Wc - 1        # spread-pool grid
    else:
        Hh, Wh = Hc, Wc
        Hs, Ws = Hc, Wc

    # Input stays NCHW (W in lanes); only a bf16 cast on the host (halves DMA bytes).
    x_bf16 = x_nchw.astype(jnp.bfloat16)

    # Conv weight as flat SMEM scalars (OIHW order), BN folded to scale/shift scalars.
    wconv_flat = conv_w.reshape(-1).astype(jnp.float32)
    scale = (gamma / jnp.sqrt(run_var + BN_EPS)).astype(jnp.float32)
    shift = (beta + scale * (conv_b - run_mean)).astype(jnp.float32)
    fcb = fc_b.astype(jnp.float32)

    # fc weight reshaped to (class, Cout, Hh, Wh) (matches PyTorch NCHW flatten order),
    # then scattered onto the spread-pool grid (zeros at invalid positions).
    wfc_r = fc_w.reshape(n_classes, Cout, Hh, Wh).astype(jnp.float32)
    if MAX_POOL:
        wfc_spread = jnp.zeros((n_classes, Cout, Hs, Ws), jnp.float32)
        wfc_spread = wfc_spread.at[:, :, 0::2, 0::2].set(wfc_r)
    else:
        wfc_spread = wfc_r

    grid_spec = pltpu.PrefetchScalarGridSpec(
        num_scalar_prefetch=0,
        grid=(N,),
        in_specs=[
            pl.BlockSpec((1, Cin, Hin, Win), lambda n: (n, 0, 0, 0)),      # x (VMEM)
            pl.BlockSpec(memory_space=pltpu.MemorySpace.SMEM),             # conv w
            pl.BlockSpec(memory_space=pltpu.MemorySpace.SMEM),             # bn scale
            pl.BlockSpec(memory_space=pltpu.MemorySpace.SMEM),             # bn shift
            pl.BlockSpec((n_classes, Cout, Hs, Ws), lambda n: (0, 0, 0, 0)),  # fc w
            pl.BlockSpec(memory_space=pltpu.MemorySpace.SMEM),             # fc bias
        ],
        out_specs=pl.BlockSpec((1, 1, LANES), lambda n: (n, 0, 0)),
        scratch_shapes=[pltpu.VMEM((Cin, Hp, Wp), jnp.float32)],
    )

    out_rows = pl.pallas_call(
        functools.partial(fused_net_kernel, ksize=KH, do_pool=MAX_POOL),
        out_shape=jax.ShapeDtypeStruct((N, 1, LANES), jnp.float32),
        grid_spec=grid_spec,
        compiler_params=pltpu.CompilerParams(
            dimension_semantics=("parallel",)),   # v7x: both TensorCores get samples
    )(x_bf16, wconv_flat, scale, shift, wfc_spread, fcb)

    return out_rows[:, 0, :n_classes]


# --------------------------- pure-JAX reference --------------------------------
def reference_forward(x_nchw, params):
    conv_w, conv_b = params["conv_w"], params["conv_b"]
    gamma, beta = params["bn_gamma"], params["bn_beta"]
    mean, var = params["bn_mean"], params["bn_var"]
    fc_w, fc_b = params["fc_w"], params["fc_b"]

    y = jax.lax.conv_general_dilated(
        x_nchw, conv_w, window_strides=(1, 1),
        padding=[(PADDING, PADDING), (PADDING, PADDING)],
        dimension_numbers=("NCHW", "OIHW", "NCHW"))
    y = y + conv_b.reshape(1, -1, 1, 1)
    y = gamma.reshape(1, -1, 1, 1) * (y - mean.reshape(1, -1, 1, 1)) \
        / jnp.sqrt(var.reshape(1, -1, 1, 1) + BN_EPS) + beta.reshape(1, -1, 1, 1)
    y = jnp.maximum(y, 0.0)
    if MAX_POOL:
        N, C, Hc, Wc = y.shape
        y = y.reshape(N, C, Hc // 2, 2, Wc // 2, 2).max(axis=(3, 5))
    y = y.reshape(y.shape[0], -1)
    return y @ fc_w.T + fc_b


# ---------------------------------- main ---------------------------------------
if __name__ == "__main__":
    key = jax.random.PRNGKey(0)
    kx, kw, kb, kg, kbt, km, kv, kfw, kfb = jax.random.split(key, 9)

    Hh, Wh = (H // 2, W // 2) if MAX_POOL else (H, W)
    F = Hh * Wh * OUT_FEATURES

    params = {
        "conv_w": jax.random.normal(kw, (OUT_FEATURES, IN_CHANNELS,
                                         KERNEL_SIZE, KERNEL_SIZE),
                                    jnp.float32) * 0.1,
        "conv_b": jax.random.normal(kb, (OUT_FEATURES,), jnp.float32) * 0.1,
        "bn_gamma": jax.random.normal(kg, (OUT_FEATURES,), jnp.float32) * 0.1 + 1.0,
        "bn_beta": jax.random.normal(kbt, (OUT_FEATURES,), jnp.float32) * 0.1,
        "bn_mean": jax.random.normal(km, (OUT_FEATURES,), jnp.float32) * 0.1,
        "bn_var": jax.random.uniform(kv, (OUT_FEATURES,), jnp.float32,
                                     minval=0.5, maxval=1.5),
        "fc_w": jax.random.normal(kfw, (NUM_CLASSES, F), jnp.float32) * 0.02,
        "fc_b": jax.random.normal(kfb, (NUM_CLASSES,), jnp.float32) * 0.02,
    }

    x = jax.random.normal(kx, (BATCH, IN_CHANNELS, H, W), jnp.float32)

    out = jax.block_until_ready(one_conv_layer_net(x, params))
    ref = jax.block_until_ready(reference_forward(x, params))

    # Only the input is bf16 (weights and accumulation are f32), so the tolerance can
    # be tighter than before while still covering bf16 rounding of x.
    np.testing.assert_allclose(np.asarray(out), np.asarray(ref),
                               rtol=1e-2, atol=1e-2)
    assert out.shape == (BATCH, NUM_CLASSES)
    print("KERNEL_OK")
</pallas_src>

<mosaic_0001>
module attributes {stable_mosaic.version = 11 : i64} {
  func.func @fused_net_kernel(%arg0: i32, %arg1: memref<1x3x16x16xbf16, #tpu.memory_space<vmem>>, %arg2: memref<108xf32, #tpu.memory_space<smem>>, %arg3: memref<4xf32, #tpu.memory_space<smem>>, %arg4: memref<4xf32, #tpu.memory_space<smem>>, %arg5: memref<2x4x15x15xf32, #tpu.memory_space<vmem>>, %arg6: memref<2xf32, #tpu.memory_space<smem>>, %arg7: memref<1x1x128xf32, #tpu.memory_space<vmem>>, %arg8: memref<3x18x18xf32, #tpu.memory_space<vmem>>) attributes {dimension_semantics = [#tpu.dimension_semantics<parallel>], iteration_bounds = array<i64: 2>, scalar_prefetch = 0 : i64, scratch_operands = 1 : i64, tpu.core_type = #tpu.core_type<tc>, window_params = [{transform_indices = @transform_0, window_bounds = array<i64: 1, 3, 16, 16>}, {transform_indices = @transform_1, window_bounds = array<i64: 108>}, {transform_indices = @transform_2, window_bounds = array<i64: 4>}, {transform_indices = @transform_3, window_bounds = array<i64: 4>}, {pipeline_mode = #tpu.pipeline_mode<synchronous>, transform_indices = @transform_4, window_bounds = array<i64: 2, 4, 15, 15>}, {transform_indices = @transform_5, window_bounds = array<i64: 2>}, {transform_indices = @transform_6, window_bounds = array<i64: 1, 1, 128>}]} {
    %cst = arith.constant 0.000000e+00 : f32
    %0 = vector.broadcast %cst : f32 to vector<3x18x18xf32>
    %c0 = arith.constant 0 : index
    %c0_0 = arith.constant 0 : index
    %c0_1 = arith.constant 0 : index
    %1 = vector.load %arg8[%c0, %c0_0, %c0_1] : memref<3x18x18xf32, #tpu.memory_space<vmem>>, vector<3x18x18xf32>
    tpu.vector_store %arg8[%c0, %c0_0, %c0_1], %0 {strides = array<i32>} : memref<3x18x18xf32, #tpu.memory_space<vmem>>, vector<3x18x18xf32>,
    %c0_2 = arith.constant 0 : index
    %c0_3 = arith.constant 0 : index
    %c0_4 = arith.constant 0 : index
    %c0_5 = arith.constant 0 : index
    %2 = vector.load %arg1[%c0_2, %c0_3, %c0_4, %c0_5] : memref<1x3x16x16xbf16, #tpu.memory_space<vmem>>, vector<1x3x16x16xbf16>
    %3 = vector.shape_cast %2 : vector<1x3x16x16xbf16> to vector<3x16x16xbf16>
    %4 = arith.extf %3 : vector<3x16x16xbf16> to vector<3x16x16xf32>
    %c0_6 = arith.constant 0 : index
    %c1 = arith.constant 1 : index
    %c1_7 = arith.constant 1 : index
    %5 = vector.load %arg8[%c0_6, %c1, %c1_7] : memref<3x18x18xf32, #tpu.memory_space<vmem>>, vector<3x16x16xf32>
    tpu.vector_store %arg8[%c0_6, %c1, %c1_7], %4 {strides = array<i32>} : memref<3x18x18xf32, #tpu.memory_space<vmem>>, vector<3x16x16xf32>,
    %cst_8 = arith.constant 0.000000e+00 : f32
    %6 = vector.broadcast %cst_8 : f32 to vector<16x16xf32>
    %cst_9 = arith.constant 0.000000e+00 : f32
    %7 = vector.broadcast %cst_9 : f32 to vector<16x16xf32>
    %cst_10 = arith.constant 0.000000e+00 : f32
    %8 = vector.broadcast %cst_10 : f32 to vector<16x16xf32>
    %cst_11 = arith.constant 0.000000e+00 : f32
    %9 = vector.broadcast %cst_11 : f32 to vector<16x16xf32>
    %c0_12 = arith.constant 0 : index
    %c0_13 = arith.constant 0 : index
    %c0_14 = arith.constant 0 : index
    %10 = vector.load %arg8[%c0_12, %c0_13, %c0_14] : memref<3x18x18xf32, #tpu.memory_space<vmem>>, vector<1x16x16xf32>
    %11 = vector.shape_cast %10 : vector<1x16x16xf32> to vector<16x16xf32>
    %c0_15 = arith.constant 0 : index
    %12 = memref.load %arg2[%c0_15] : memref<108xf32, #tpu.memory_space<smem>>
    %13 = vector.broadcast %12 : f32 to vector<16x16xf32>
    %14 = arith.mulf %13, %11 : vector<16x16xf32>
    %15 = arith.addf %6, %14 : vector<16x16xf32>
    %c27 = arith.constant 27 : index
    %16 = memref.load %arg2[%c27] : memref<108xf32, #tpu.memory_space<smem>>
    %17 = vector.broadcast %16 : f32 to vector<16x16xf32>
    %18 = arith.mulf %17, %11 : vector<16x16xf32>
    %19 = arith.addf %7, %18 : vector<16x16xf32>
    %c54 = arith.constant 54 : index
    %20 = memref.load %arg2[%c54] : memref<108xf32, #tpu.memory_space<smem>>
    %21 = vector.broadcast %20 : f32 to vector<16x16xf32>
    %22 = arith.mulf %21, %11 : vector<16x16xf32>
    %23 = arith.addf %8, %22 : vector<16x16xf32>
    %c81 = arith.constant 81 : index
    %24 = memref.load %arg2[%c81] : memref<108xf32, #tpu.memory_space<smem>>
    %25 = vector.broadcast %24 : f32 to vector<16x16xf32>
    %26 = arith.mulf %25, %11 : vector<16x16xf32>
    %27 = arith.addf %9, %26 : vector<16x16xf32>
    %c0_16 = arith.constant 0 : index
    %c0_17 = arith.constant 0 : index
    %c1_18 = arith.constant 1 : index
    %28 = vector.load %arg8[%c0_16, %c0_17, %c1_18] : memref<3x18x18xf32, #tpu.memory_space<vmem>>, vector<1x16x16xf32>
    %29 = vector.shape_cast %28 : vector<1x16x16xf32> to vector<16x16xf32>
    %c1_19 = arith.constant 1 : index
    %30 = memref.load %arg2[%c1_19] : memref<108xf32, #tpu.memory_space<smem>>
    %31 = vector.broadcast %30 : f32 to vector<16x16xf32>
    %32 = arith.mulf %31, %29 : vector<16x16xf32>
    %33 = arith.addf %15, %32 : vector<16x16xf32>
    %c28 = arith.constant 28 : index
    %34 = memref.load %arg2[%c28] : memref<108xf32, #tpu.memory_space<smem>>
    %35 = vector.broadcast %34 : f32 to vector<16x16xf32>
    %36 = arith.mulf %35, %29 : vector<16x16xf32>
    %37 = arith.addf %19, %36 : vector<16x16xf32>
    %c55 = arith.constant 55 : index
    %38 = memref.load %arg2[%c55] : memref<108xf32, #tpu.memory_space<smem>>
    %39 = vector.broadcast %38 : f32 to vector<16x16xf32>
    %40 = arith.mulf %39, %29 : vector<16x16xf32>
    %41 = arith.addf %23, %40 : vector<16x16xf32>
    %c82 = arith.constant 82 : index
    %42 = memref.load %arg2[%c82] : memref<108xf32, #tpu.memory_space<smem>>
    %43 = vector.broadcast %42 : f32 to vector<16x16xf32>
    %44 = arith.mulf %43, %29 : vector<16x16xf32>
    %45 = arith.addf %27, %44 : vector<16x16xf32>
    %c0_20 = arith.constant 0 : index
    %c0_21 = arith.constant 0 : index
    %c2 = arith.constant 2 : index
    %46 = vector.load %arg8[%c0_20, %c0_21, %c2] : memref<3x18x18xf32, #tpu.memory_space<vmem>>, vector<1x16x16xf32>
    %47 = vector.shape_cast %46 : vector<1x16x16xf32> to vector<16x16xf32>
    %c2_22 = arith.constant 2 : index
    %48 = memref.load %arg2[%c2_22] : memref<108xf32, #tpu.memory_space<smem>>
    %49 = vector.broadcast %48 : f32 to vector<16x16xf32>
    %50 = arith.mulf %49, %47 : vector<16x16xf32>
    %51 = arith.addf %33, %50 : vector<16x16xf32>
    %c29 = arith.constant 29 : index
    %52 = memref.load %arg2[%c29] : memref<108xf32, #tpu.memory_space<smem>>
    %53 = vector.broadcast %52 : f32 to vector<16x16xf32>
    %54 = arith.mulf %53, %47 : vector<16x16xf32>
    %55 = arith.addf %37, %54 : vector<16x16xf32>
    %c56 = arith.constant 56 : index
    %56 = memref.load %arg2[%c56] : memref<108xf32, #tpu.memory_space<smem>>
    %57 = vector.broadcast %56 : f32 to vector<16x16xf32>
    %58 = arith.mulf %57, %47 : vector<16x16xf32>
    %59 = arith.addf %41, %58 : vector<16x16xf32>
    %c83 = arith.constant 83 : index
    %60 = memref.load %arg2[%c83] : memref<108xf32, #tpu.memory_space<smem>>
    %61 = vector.broadcast %60 : f32 to vector<16x16xf32>
    %62 = arith.mulf %61, %47 : vector<16x16xf32>
    %63 = arith.addf %45, %62 : vector<16x16xf32>
    %c0_23 = arith.constant 0 : index
    %c1_24 = arith.constant 1 : index
    %c0_25 = arith.constant 0 : index
    %64 = vector.load %arg8[%c0_23, %c1_24, %c0_25] : memref<3x18x18xf32, #tpu.memory_space<vmem>>, vector<1x16x16xf32>
    %65 = vector.shape_cast %64 : vector<1x16x16xf32> to vector<16x16xf32>
    %c3 = arith.constant 3 : index
    %66 = memref.load %arg2[%c3] : memref<108xf32, #tpu.memory_space<smem>>
    %67 = vector.broadcast %66 : f32 to vector<16x16xf32>
    %68 = arith.mulf %67, %65 : vector<16x16xf32>
    %69 = arith.addf %51, %68 : vector<16x16xf32>
    %c30 = arith.constant 30 : index
    %70 = memref.load %arg2[%c30] : memref<108xf32, #tpu.memory_space<smem>>
    %71 = vector.broadcast %70 : f32 to vector<16x16xf32>
    %72 = arith.mulf %71, %65 : vector<16x16xf32>
    %73 = arith.addf %55, %72 : vector<16x16xf32>
    %c57 = arith.constant 57 : index
    %74 = memref.load %arg2[%c57] : memref<108xf32, #tpu.memory_space<smem>>
    %75 = vector.broadcast %74 : f32 to vector<16x16xf32>
    %76 = arith.mulf %75, %65 : vector<16x16xf32>
    %77 = arith.addf %59, %76 : vector<16x16xf32>
    %c84 = arith.constant 84 : index
    %78 = memref.load %arg2[%c84] : memref<108xf32, #tpu.memory_space<smem>>
    %79 = vector.broadcast %78 : f32 to vector<16x16xf32>
    %80 = arith.mulf %79, %65 : vector<16x16xf32>
    %81 = arith.addf %63, %80 : vector<16x16xf32>
    %c0_26 = arith.constant 0 : index
    %c1_27 = arith.constant 1 : index
    %c1_28 = arith.constant 1 : index
    %82 = vector.load %arg8[%c0_26, %c1_27, %c1_28] : memref<3x18x18xf32, #tpu.memory_space<vmem>>, vector<1x16x16xf32>
    %83 = vector.shape_cast %82 : vector<1x16x16xf32> to vector<16x16xf32>
    %c4 = arith.constant 4 : index
    %84 = memref.load %arg2[%c4] : memref<108xf32, #tpu.memory_space<smem>>
    %85 = vector.broadcast %84 : f32 to vector<16x16xf32>
    %86 = arith.mulf %85, %83 : vector<16x16xf32>
    %87 = arith.addf %69, %86 : vector<16x16xf32>
    %c31 = arith.constant 31 : index
    %88 = memref.load %arg2[%c31] : memref<108xf32, #tpu.memory_space<smem>>
    %89 = vector.broadcast %88 : f32 to vector<16x16xf32>
    %90 = arith.mulf %89, %83 : vector<16x16xf32>
    %91 = arith.addf %73, %90 : vector<16x16xf32>
    %c58 = arith.constant 58 : index
    %92 = memref.load %arg2[%c58] : memref<108xf32, #tpu.memory_space<smem>>
    %93 = vector.broadcast %92 : f32 to vector<16x16xf32>
    %94 = arith.mulf %93, %83 : vector<16x16xf32>
    %95 = arith.addf %77, %94 : vector<16x16xf32>
    %c85 = arith.constant 85 : index
    %96 = memref.load %arg2[%c85] : memref<108xf32, #tpu.memory_space<smem>>
    %97 = vector.broadcast %96 : f32 to vector<16x16xf32>
    %98 = arith.mulf %97, %83 : vector<16x16xf32>
    %99 = arith.addf %81, %98 : vector<16x16xf32>
    %c0_29 = arith.constant 0 : index
    %c1_30 = arith.constant 1 : index
    %c2_31 = arith.constant 2 : index
    %100 = vector.load %arg8[%c0_29, %c1_30, %c2_31] : memref<3x18x18xf32, #tpu.memory_space<vmem>>, vector<1x16x16xf32>
    %101 = vector.shape_cast %100 : vector<1x16x16xf32> to vector<16x16xf32>
    %c5 = arith.constant 5 : index
    %102 = memref.load %arg2[%c5] : memref<108xf32, #tpu.memory_space<smem>>
    %103 = vector.broadcast %102 : f32 to vector<16x16xf32>
    %104 = arith.mulf %103, %101 : vector<16x16xf32>
    %105 = arith.addf %87, %104 : vector<16x16xf32>
    %c32 = arith.constant 32 : index
    %106 = memref.load %arg2[%c32] : memref<108xf32, #tpu.memory_space<smem>>
    %107 = vector.broadcast %106 : f32 to vector<16x16xf32>
    %108 = arith.mulf %107, %101 : vector<16x16xf32>
    %109 = arith.addf %91, %108 : vector<16x16xf32>
    %c59 = arith.constant 59 : index
    %110 = memref.load %arg2[%c59] : memref<108xf32, #tpu.memory_space<smem>>
    %111 = vector.broadcast %110 : f32 to vector<16x16xf32>
    %112 = arith.mulf %111, %101 : vector<16x16xf32>
    %113 = arith.addf %95, %112 : vector<16x16xf32>
    %c86 = arith.constant 86 : index
    %114 = memref.load %arg2[%c86] : memref<108xf32, #tpu.memory_space<smem>>
    %115 = vector.broadcast %114 : f32 to vector<16x16xf32>
    %116 = arith.mulf %115, %101 : vector<16x16xf32>
    %117 = arith.addf %99, %116 : vector<16x16xf32>
    %c0_32 = arith.constant 0 : index
    %c2_33 = arith.constant 2 : index
    %c0_34 = arith.constant 0 : index
    %118 = vector.load %arg8[%c0_32, %c2_33, %c0_34] : memref<3x18x18xf32, #tpu.memory_space<vmem>>, vector<1x16x16xf32>
    %119 = vector.shape_cast %118 : vector<1x16x16xf32> to vector<16x16xf32>
    %c6 = arith.constant 6 : index
    %120 = memref.load %arg2[%c6] : memref<108xf32, #tpu.memory_space<smem>>
    %121 = vector.broadcast %120 : f32 to vector<16x16xf32>
    %122 = arith.mulf %121, %119 : vector<16x16xf32>
    %123 = arith.addf %105, %122 : vector<16x16xf32>
    %c33 = arith.constant 33 : index
    %124 = memref.load %arg2[%c33] : memref<108xf32, #tpu.memory_space<smem>>
    %125 = vector.broadcast %124 : f32 to vector<16x16xf32>
    %126 = arith.mulf %125, %119 : vector<16x16xf32>
    %127 = arith.addf %109, %126 : vector<16x16xf32>
    %c60 = arith.constant 60 : index
    %128 = memref.load %arg2[%c60] : memref<108xf32, #tpu.memory_space<smem>>
    %129 = vector.broadcast %128 : f32 to vector<16x16xf32>
    %130 = arith.mulf %129, %119 : vector<16x16xf32>
    %131 = arith.addf %113, %130 : vector<16x16xf32>
    %c87 = arith.constant 87 : index
    %132 = memref.load %arg2[%c87] : memref<108xf32, #tpu.memory_space<smem>>
    %133 = vector.broadcast %132 : f32 to vector<16x16xf32>
    %134 = arith.mulf %133, %119 : vector<16x16xf32>
    %135 = arith.addf %117, %134 : vector<16x16xf32>
    %c0_35 = arith.constant 0 : index
    %c2_36 = arith.constant 2 : index
    %c1_37 = arith.constant 1 : index
    %136 = vector.load %arg8[%c0_35, %c2_36, %c1_37] : memref<3x18x18xf32, #tpu.memory_space<vmem>>, vector<1x16x16xf32>
    %137 = vector.shape_cast %136 : vector<1x16x16xf32> to vector<16x16xf32>
    %c7 = arith.constant 7 : index
    %138 = memref.load %arg2[%c7] : memref<108xf32, #tpu.memory_space<smem>>
    %139 = vector.broadcast %138 : f32 to vector<16x16xf32>
    %140 = arith.mulf %139, %137 : vector<16x16xf32>
    %141 = arith.addf %123, %140 : vector<16x16xf32>
    %c34 = arith.constant 34 : index
    %142 = memref.load %arg2[%c34] : memref<108xf32, #tpu.memory_space<smem>>
    %143 = vector.broadcast %142 : f32 to vector<16x16xf32>
    %144 = arith.mulf %143, %137 : vector<16x16xf32>
    %145 = arith.addf %127, %144 : vector<16x16xf32>
    %c61 = arith.constant 61 : index
    %146 = memref.load %arg2[%c61] : memref<108xf32, #tpu.memory_space<smem>>
    %147 = vector.broadcast %146 : f32 to vector<16x16xf32>
    %148 = arith.mulf %147, %137 : vector<16x16xf32>
    %149 = arith.addf %131, %148 : vector<16x16xf32>
    %c88 = arith.constant 88 : index
    %150 = memref.load %arg2[%c88] : memref<108xf32, #tpu.memory_space<smem>>
    %151 = vector.broadcast %150 : f32 to vector<16x16xf32>
    %152 = arith.mulf %151, %137 : vector<16x16xf32>
    %153 = arith.addf %135, %152 : vector<16x16xf32>
    %c0_38 = arith.constant 0 : index
    %c2_39 = arith.constant 2 : index
    %c2_40 = arith.constant 2 : index
    %154 = vector.load %arg8[%c0_38, %c2_39, %c2_40] : memref<3x18x18xf32, #tpu.memory_space<vmem>>, vector<1x16x16xf32>
    %155 = vector.shape_cast %154 : vector<1x16x16xf32> to vector<16x16xf32>
    %c8 = arith.constant 8 : index
    %156 = memref.load %arg2[%c8] : memref<108xf32, #tpu.memory_space<smem>>
    %157 = vector.broadcast %156 : f32 to vector<16x16xf32>
    %158 = arith.mulf %157, %155 : vector<16x16xf32>
    %159 = arith.addf %141, %158 : vector<16x16xf32>
    %c35 = arith.constant 35 : index
    %160 = memref.load %arg2[%c35] : memref<108xf32, #tpu.memory_space<smem>>
    %161 = vector.broadcast %160 : f32 to vector<16x16xf32>
    %162 = arith.mulf %161, %155 : vector<16x16xf32>
    %163 = arith.addf %145, %162 : vector<16x16xf32>
    %c62 = arith.constant 62 : index
    %164 = memref.load %arg2[%c62] : memref<108xf32, #tpu.memory_space<smem>>
    %165 = vector.broadcast %164 : f32 to vector<16x16xf32>
    %166 = arith.mulf %165, %155 : vector<16x16xf32>
    %167 = arith.addf %149, %166 : vector<16x16xf32>
    %c89 = arith.constant 89 : index
    %168 = memref.load %arg2[%c89] : memref<108xf32, #tpu.memory_space<smem>>
    %169 = vector.broadcast %168 : f32 to vector<16x16xf32>
    %170 = arith.mulf %169, %155 : vector<16x16xf32>
    %171 = arith.addf %153, %170 : vector<16x16xf32>
    %c1_41 = arith.constant 1 : index
    %c0_42 = arith.constant 0 : index
    %c0_43 = arith.constant 0 : index
    %172 = vector.load %arg8[%c1_41, %c0_42, %c0_43] : memref<3x18x18xf32, #tpu.memory_space<vmem>>, vector<1x16x16xf32>
    %173 = vector.shape_cast %172 : vector<1x16x16xf32> to vector<16x16xf32>
    %c9 = arith.constant 9 : index
    %174 = memref.load %arg2[%c9] : memref<108xf32, #tpu.memory_space<smem>>
    %175 = vector.broadcast %174 : f32 to vector<16x16xf32>
    %176 = arith.mulf %175, %173 : vector<16x16xf32>
    %177 = arith.addf %159, %176 : vector<16x16xf32>
    %c36 = arith.constant 36 : index
    %178 = memref.load %arg2[%c36] : memref<108xf32, #tpu.memory_space<smem>>
    %179 = vector.broadcast %178 : f32 to vector<16x16xf32>
    %180 = arith.mulf %179, %173 : vector<16x16xf32>
    %181 = arith.addf %163, %180 : vector<16x16xf32>
    %c63 = arith.constant 63 : index
    %182 = memref.load %arg2[%c63] : memref<108xf32, #tpu.memory_space<smem>>
    %183 = vector.broadcast %182 : f32 to vector<16x16xf32>
    %184 = arith.mulf %183, %173 : vector<16x16xf32>
    %185 = arith.addf %167, %184 : vector<16x16xf32>
    %c90 = arith.constant 90 : index
    %186 = memref.load %arg2[%c90] : memref<108xf32, #tpu.memory_space<smem>>
    %187 = vector.broadcast %186 : f32 to vector<16x16xf32>
    %188 = arith.mulf %187, %173 : vector<16x16xf32>
    %189 = arith.addf %171, %188 : vector<16x16xf32>
    %c1_44 = arith.constant 1 : index
    %c0_45 = arith.constant 0 : index
    %c1_46 = arith.constant 1 : index
    %190 = vector.load %arg8[%c1_44, %c0_45, %c1_46] : memref<3x18x18xf32, #tpu.memory_space<vmem>>, vector<1x16x16xf32>
    %191 = vector.shape_cast %190 : vector<1x16x16xf32> to vector<16x16xf32>
    %c10 = arith.constant 10 : index
    %192 = memref.load %arg2[%c10] : memref<108xf32, #tpu.memory_space<smem>>
    %193 = vector.broadcast %192 : f32 to vector<16x16xf32>
    %194 = arith.mulf %193, %191 : vector<16x16xf32>
    %195 = arith.addf %177, %194 : vector<16x16xf32>
    %c37 = arith.constant 37 : index
    %196 = memref.load %arg2[%c37] : memref<108xf32, #tpu.memory_space<smem>>
    %197 = vector.broadcast %196 : f32 to vector<16x16xf32>
    %198 = arith.mulf %197, %191 : vector<16x16xf32>
    %199 = arith.addf %181, %198 : vector<16x16xf32>
    %c64 = arith.constant 64 : index
    %200 = memref.load %arg2[%c64] : memref<108xf32, #tpu.memory_space<smem>>
    %201 = vector.broadcast %200 : f32 to vector<16x16xf32>
    %202 = arith.mulf %201, %191 : vector<16x16xf32>
    %203 = arith.addf %185, %202 : vector<16x16xf32>
    %c91 = arith.constant 91 : index
    %204 = memref.load %arg2[%c91] : memref<108xf32, #tpu.memory_space<smem>>
    %205 = vector.broadcast %204 : f32 to vector<16x16xf32>
    %206 = arith.mulf %205, %191 : vector<16x16xf32>
    %207 = arith.addf %189, %206 : vector<16x16xf32>
    %c1_47 = arith.constant 1 : index
    %c0_48 = arith.constant 0 : index
    %c2_49 = arith.constant 2 : index
    %208 = vector.load %arg8[%c1_47, %c0_48, %c2_49] : memref<3x18x18xf32, #tpu.memory_space<vmem>>, vector<1x16x16xf32>
    %209 = vector.shape_cast %208 : vector<1x16x16xf32> to vector<16x16xf32>
    %c11 = arith.constant 11 : index
    %210 = memref.load %arg2[%c11] : memref<108xf32, #tpu.memory_space<smem>>
    %211 = vector.broadcast %210 : f32 to vector<16x16xf32>
    %212 = arith.mulf %211, %209 : vector<16x16xf32>
    %213 = arith.addf %195, %212 : vector<16x16xf32>
    %c38 = arith.constant 38 : index
    %214 = memref.load %arg2[%c38] : memref<108xf32, #tpu.memory_space<smem>>
    %215 = vector.broadcast %214 : f32 to vector<16x16xf32>
    %216 = arith.mulf %215, %209 : vector<16x16xf32>
    %217 = arith.addf %199, %216 : vector<16x16xf32>
    %c65 = arith.constant 65 : index
    %218 = memref.load %arg2[%c65] : memref<108xf32, #tpu.memory_space<smem>>
    %219 = vector.broadcast %218 : f32 to vector<16x16xf32>
    %220 = arith.mulf %219, %209 : vector<16x16xf32>
    %221 = arith.addf %203, %220 : vector<16x16xf32>
    %c92 = arith.constant 92 : index
    %222 = memref.load %arg2[%c92] : memref<108xf32, #tpu.memory_space<smem>>
    %223 = vector.broadcast %222 : f32 to vector<16x16xf32>
    %224 = arith.mulf %223, %209 : vector<16x16xf32>
    %225 = arith.addf %207, %224 : vector<16x16xf32>
    %c1_50 = arith.constant 1 : index
    %c1_51 = arith.constant 1 : index
    %c0_52 = arith.constant 0 : index
    %226 = vector.load %arg8[%c1_50, %c1_51, %c0_52] : memref<3x18x18xf32, #tpu.memory_space<vmem>>, vector<1x16x16xf32>
    %227 = vector.shape_cast %226 : vector<1x16x16xf32> to vector<16x16xf32>
    %c12 = arith.constant 12 : index
    %228 = memref.load %arg2[%c12] : memref<108xf32, #tpu.memory_space<smem>>
    %229 = vector.broadcast %228 : f32 to vector<16x16xf32>
    %230 = arith.mulf %229, %227 : vector<16x16xf32>
    %231 = arith.addf %213, %230 : vector<16x16xf32>
    %c39 = arith.constant 39 : index
    %232 = memref.load %arg2[%c39] : memref<108xf32, #tpu.memory_space<smem>>
    %233 = vector.broadcast %232 : f32 to vector<16x16xf32>
    %234 = arith.mulf %233, %227 : vector<16x16xf32>
    %235 = arith.addf %217, %234 : vector<16x16xf32>
    %c66 = arith.constant 66 : index
    %236 = memref.load %arg2[%c66] : memref<108xf32, #tpu.memory_space<smem>>
    %237 = vector.broadcast %236 : f32 to vector<16x16xf32>
    %238 = arith.mulf %237, %227 : vector<16x16xf32>
    %239 = arith.addf %221, %238 : vector<16x16xf32>
    %c93 = arith.constant 93 : index
    %240 = memref.load %arg2[%c93] : memref<108xf32, #tpu.memory_space<smem>>
    %241 = vector.broadcast %240 : f32 to vector<16x16xf32>
    %242 = arith.mulf %241, %227 : vector<16x16xf32>
    %243 = arith.addf %225, %242 : vector<16x16xf32>
    %c1_53 = arith.constant 1 : index
    %c1_54 = arith.constant 1 : index
    %c1_55 = arith.constant 1 : index
    %244 = vector.load %arg8[%c1_53, %c1_54, %c1_55] : memref<3x18x18xf32, #tpu.memory_space<vmem>>, vector<1x16x16xf32>
    %245 = vector.shape_cast %244 : vector<1x16x16xf32> to vector<16x16xf32>
    %c13 = arith.constant 13 : index
    %246 = memref.load %arg2[%c13] : memref<108xf32, #tpu.memory_space<smem>>
    %247 = vector.broadcast %246 : f32 to vector<16x16xf32>
    %248 = arith.mulf %247, %245 : vector<16x16xf32>
    %249 = arith.addf %231, %248 : vector<16x16xf32>
    %c40 = arith.constant 40 : index
    %250 = memref.load %arg2[%c40] : memref<108xf32, #tpu.memory_space<smem>>
    %251 = vector.broadcast %250 : f32 to vector<16x16xf32>
    %252 = arith.mulf %251, %245 : vector<16x16xf32>
    %253 = arith.addf %235, %252 : vector<16x16xf32>
    %c67 = arith.constant 67 : index
    %254 = memref.load %arg2[%c67] : memref<108xf32, #tpu.memory_space<smem>>
    %255 = vector.broadcast %254 : f32 to vector<16x16xf32>
    %256 = arith.mulf %255, %245 : vector<16x16xf32>
    %257 = arith.addf %239, %256 : vector<16x16xf32>
    %c94 = arith.constant 94 : index
    %258 = memref.load %arg2[%c94] : memref<108xf32, #tpu.memory_space<smem>>
    %259 = vector.broadcast %258 : f32 to vector<16x16xf32>
    %260 = arith.mulf %259, %245 : vector<16x16xf32>
    %261 = arith.addf %243, %260 : vector<16x16xf32>
    %c1_56 = arith.constant 1 : index
    %c1_57 = arith.constant 1 : index
    %c2_58 = arith.constant 2 : index
    %262 = vector.load %arg8[%c1_56, %c1_57, %c2_58] : memref<3x18x18xf32, #tpu.memory_space<vmem>>, vector<1x16x16xf32>
    %263 = vector.shape_cast %262 : vector<1x16x16xf32> to vector<16x16xf32>
    %c14 = arith.constant 14 : index
    %264 = memref.load %arg2[%c14] : memref<108xf32, #tpu.memory_space<smem>>
    %265 = vector.broadcast %264 : f32 to vector<16x16xf32>
    %266 = arith.mulf %265, %263 : vector<16x16xf32>
    %267 = arith.addf %249, %266 : vector<16x16xf32>
    %c41 = arith.constant 41 : index
    %268 = memref.load %arg2[%c41] : memref<108xf32, #tpu.memory_space<smem>>
    %269 = vector.broadcast %268 : f32 to vector<16x16xf32>
    %270 = arith.mulf %269, %263 : vector<16x16xf32>
    %271 = arith.addf %253, %270 : vector<16x16xf32>
    %c68 = arith.constant 68 : index
    %272 = memref.load %arg2[%c68] : memref<108xf32, #tpu.memory_space<smem>>
    %273 = vector.broadcast %272 : f32 to vector<16x16xf32>
    %274 = arith.mulf %273, %263 : vector<16x16xf32>
    %275 = arith.addf %257, %274 : vector<16x16xf32>
    %c95 = arith.constant 95 : index
    %276 = memref.load %arg2[%c95] : memref<108xf32, #tpu.memory_space<smem>>
    %277 = vector.broadcast %276 : f32 to vector<16x16xf32>
    %278 = arith.mulf %277, %263 : vector<16x16xf32>
    %279 = arith.addf %261, %278 : vector<16x16xf32>
    %c1_59 = arith.constant 1 : index
    %c2_60 = arith.constant 2 : index
    %c0_61 = arith.constant 0 : index
    %280 = vector.load %arg8[%c1_59, %c2_60, %c0_61] : memref<3x18x18xf32, #tpu.memory_space<vmem>>, vector<1x16x16xf32>
    %281 = vector.shape_cast %280 : vector<1x16x16xf32> to vector<16x16xf32>
    %c15 = arith.constant 15 : index
    %282 = memref.load %arg2[%c15] : memref<108xf32, #tpu.memory_space<smem>>
    %283 = vector.broadcast %282 : f32 to vector<16x16xf32>
    %284 = arith.mulf %283, %281 : vector<16x16xf32>
    %285 = arith.addf %267, %284 : vector<16x16xf32>
    %c42 = arith.constant 42 : index
    %286 = memref.load %arg2[%c42] : memref<108xf32, #tpu.memory_space<smem>>
    %287 = vector.broadcast %286 : f32 to vector<16x16xf32>
    %288 = arith.mulf %287, %281 : vector<16x16xf32>
    %289 = arith.addf %271, %288 : vector<16x16xf32>
    %c69 = arith.constant 69 : index
    %290 = memref.load %arg2[%c69] : memref<108xf32, #tpu.memory_space<smem>>
    %291 = vector.broadcast %290 : f32 to vector<16x16xf32>
    %292 = arith.mulf %291, %281 : vector<16x16xf32>
    %293 = arith.addf %275, %292 : vector<16x16xf32>
    %c96 = arith.constant 96 : index
    %294 = memref.load %arg2[%c96] : memref<108xf32, #tpu.memory_space<smem>>
    %295 = vector.broadcast %294 : f32 to vector<16x16xf32>
    %296 = arith.mulf %295, %281 : vector<16x16xf32>
    %297 = arith.addf %279, %296 : vector<16x16xf32>
    %c1_62 = arith.constant 1 : index
    %c2_63 = arith.constant 2 : index
    %c1_64 = arith.constant 1 : index
    %298 = vector.load %arg8[%c1_62, %c2_63, %c1_64] : memref<3x18x18xf32, #tpu.memory_space<vmem>>, vector<1x16x16xf32>
    %299 = vector.shape_cast %298 : vector<1x16x16xf32> to vector<16x16xf32>
    %c16 = arith.constant 16 : index
    %300 = memref.load %arg2[%c16] : memref<108xf32, #tpu.memory_space<smem>>
    %301 = vector.broadcast %300 : f32 to vector<16x16xf32>
    %302 = arith.mulf %301, %299 : vector<16x16xf32>
    %303 = arith.addf %285, %302 : vector<16x16xf32>
    %c43 = arith.constant 43 : index
    %304 = memref.load %arg2[%c43] : memref<108xf32, #tpu.memory_space<smem>>
    %305 = vector.broadcast %304 : f32 to vector<16x16xf32>
    %306 = arith.mulf %305, %299 : vector<16x16xf32>
    %307 = arith.addf %289, %306 : vector<16x16xf32>
    %c70 = arith.constant 70 : index
    %308 = memref.load %arg2[%c70] : memref<108xf32, #tpu.memory_space<smem>>
    %309 = vector.broadcast %308 : f32 to vector<16x16xf32>
    %310 = arith.mulf %309, %299 : vector<16x16xf32>
    %311 = arith.addf %293, %310 : vector<16x16xf32>
    %c97 = arith.constant 97 : index
    %312 = memref.load %arg2[%c97] : memref<108xf32, #tpu.memory_space<smem>>
    %313 = vector.broadcast %312 : f32 to vector<16x16xf32>
    %314 = arith.mulf %313, %299 : vector<16x16xf32>
    %315 = arith.addf %297, %314 : vector<16x16xf32>
    %c1_65 = arith.constant 1 : index
    %c2_66 = arith.constant 2 : index
    %c2_67 = arith.constant 2 : index
    %316 = vector.load %arg8[%c1_65, %c2_66, %c2_67] : memref<3x18x18xf32, #tpu.memory_space<vmem>>, vector<1x16x16xf32>
    %317 = vector.shape_cast %316 : vector<1x16x16xf32> to vector<16x16xf32>
    %c17 = arith.constant 17 : index
    %318 = memref.load %arg2[%c17] : memref<108xf32, #tpu.memory_space<smem>>
    %319 = vector.broadcast %318 : f32 to vector<16x16xf32>
    %320 = arith.mulf %319, %317 : vector<16x16xf32>
    %321 = arith.addf %303, %320 : vector<16x16xf32>
    %c44 = arith.constant 44 : index
    %322 = memref.load %arg2[%c44] : memref<108xf32, #tpu.memory_space<smem>>
    %323 = vector.broadcast %322 : f32 to vector<16x16xf32>
    %324 = arith.mulf %323, %317 : vector<16x16xf32>
    %325 = arith.addf %307, %324 : vector<16x16xf32>
    %c71 = arith.constant 71 : index
    %326 = memref.load %arg2[%c71] : memref<108xf32, #tpu.memory_space<smem>>
    %327 = vector.broadcast %326 : f32 to vector<16x16xf32>
    %328 = arith.mulf %327, %317 : vector<16x16xf32>
    %329 = arith.addf %311, %328 : vector<16x16xf32>
    %c98 = arith.constant 98 : index
    %330 = memref.load %arg2[%c98] : memref<108xf32, #tpu.memory_space<smem>>
    %331 = vector.broadcast %330 : f32 to vector<16x16xf32>
    %332 = arith.mulf %331, %317 : vector<16x16xf32>
    %333 = arith.addf %315, %332 : vector<16x16xf32>
    %c2_68 = arith.constant 2 : index
    %c0_69 = arith.constant 0 : index
    %c0_70 = arith.constant 0 : index
    %334 = vector.load %arg8[%c2_68, %c0_69, %c0_70] : memref<3x18x18xf32, #tpu.memory_space<vmem>>, vector<1x16x16xf32>
    %335 = vector.shape_cast %334 : vector<1x16x16xf32> to vector<16x16xf32>
    %c18 = arith.constant 18 : index
    %336 = memref.load %arg2[%c18] : memref<108xf32, #tpu.memory_space<smem>>
    %337 = vector.broadcast %336 : f32 to vector<16x16xf32>
    %338 = arith.mulf %337, %335 : vector<16x16xf32>
    %339 = arith.addf %321, %338 : vector<16x16xf32>
    %c45 = arith.constant 45 : index
    %340 = memref.load %arg2[%c45] : memref<108xf32, #tpu.memory_space<smem>>
    %341 = vector.broadcast %340 : f32 to vector<16x16xf32>
    %342 = arith.mulf %341, %335 : vector<16x16xf32>
    %343 = arith.addf %325, %342 : vector<16x16xf32>
    %c72 = arith.constant 72 : index
    %344 = memref.load %arg2[%c72] : memref<108xf32, #tpu.memory_space<smem>>
    %345 = vector.broadcast %344 : f32 to vector<16x16xf32>
    %346 = arith.mulf %345, %335 : vector<16x16xf32>
    %347 = arith.addf %329, %346 : vector<16x16xf32>
    %c99 = arith.constant 99 : index
    %348 = memref.load %arg2[%c99] : memref<108xf32, #tpu.memory_space<smem>>
    %349 = vector.broadcast %348 : f32 to vector<16x16xf32>
    %350 = arith.mulf %349, %335 : vector<16x16xf32>
    %351 = arith.addf %333, %350 : vector<16x16xf32>
    %c2_71 = arith.constant 2 : index
    %c0_72 = arith.constant 0 : index
    %c1_73 = arith.constant 1 : index
    %352 = vector.load %arg8[%c2_71, %c0_72, %c1_73] : memref<3x18x18xf32, #tpu.memory_space<vmem>>, vector<1x16x16xf32>
    %353 = vector.shape_cast %352 : vector<1x16x16xf32> to vector<16x16xf32>
    %c19 = arith.constant 19 : index
    %354 = memref.load %arg2[%c19] : memref<108xf32, #tpu.memory_space<smem>>
    %355 = vector.broadcast %354 : f32 to vector<16x16xf32>
    %356 = arith.mulf %355, %353 : vector<16x16xf32>
    %357 = arith.addf %339, %356 : vector<16x16xf32>
    %c46 = arith.constant 46 : index
    %358 = memref.load %arg2[%c46] : memref<108xf32, #tpu.memory_space<smem>>
    %359 = vector.broadcast %358 : f32 to vector<16x16xf32>
    %360 = arith.mulf %359, %353 : vector<16x16xf32>
    %361 = arith.addf %343, %360 : vector<16x16xf32>
    %c73 = arith.constant 73 : index
    %362 = memref.load %arg2[%c73] : memref<108xf32, #tpu.memory_space<smem>>
    %363 = vector.broadcast %362 : f32 to vector<16x16xf32>
    %364 = arith.mulf %363, %353 : vector<16x16xf32>
    %365 = arith.addf %347, %364 : vector<16x16xf32>
    %c100 = arith.constant 100 : index
    %366 = memref.load %arg2[%c100] : memref<108xf32, #tpu.memory_space<smem>>
    %367 = vector.broadcast %366 : f32 to vector<16x16xf32>
    %368 = arith.mulf %367, %353 : vector<16x16xf32>
    %369 = arith.addf %351, %368 : vector<16x16xf32>
    %c2_74 = arith.constant 2 : index
    %c0_75 = arith.constant 0 : index
    %c2_76 = arith.constant 2 : index
    %370 = vector.load %arg8[%c2_74, %c0_75, %c2_76] : memref<3x18x18xf32, #tpu.memory_space<vmem>>, vector<1x16x16xf32>
    %371 = vector.shape_cast %370 : vector<1x16x16xf32> to vector<16x16xf32>
    %c20 = arith.constant 20 : index
    %372 = memref.load %arg2[%c20] : memref<108xf32, #tpu.memory_space<smem>>
    %373 = vector.broadcast %372 : f32 to vector<16x16xf32>
    %374 = arith.mulf %373, %371 : vector<16x16xf32>
    %375 = arith.addf %357, %374 : vector<16x16xf32>
    %c47 = arith.constant 47 : index
    %376 = memref.load %arg2[%c47] : memref<108xf32, #tpu.memory_space<smem>>
    %377 = vector.broadcast %376 : f32 to vector<16x16xf32>
    %378 = arith.mulf %377, %371 : vector<16x16xf32>
    %379 = arith.addf %361, %378 : vector<16x16xf32>
    %c74 = arith.constant 74 : index
    %380 = memref.load %arg2[%c74] : memref<108xf32, #tpu.memory_space<smem>>
    %381 = vector.broadcast %380 : f32 to vector<16x16xf32>
    %382 = arith.mulf %381, %371 : vector<16x16xf32>
    %383 = arith.addf %365, %382 : vector<16x16xf32>
    %c101 = arith.constant 101 : index
    %384 = memref.load %arg2[%c101] : memref<108xf32, #tpu.memory_space<smem>>
    %385 = vector.broadcast %384 : f32 to vector<16x16xf32>
    %386 = arith.mulf %385, %371 : vector<16x16xf32>
    %387 = arith.addf %369, %386 : vector<16x16xf32>
    %c2_77 = arith.constant 2 : index
    %c1_78 = arith.constant 1 : index
    %c0_79 = arith.constant 0 : index
    %388 = vector.load %arg8[%c2_77, %c1_78, %c0_79] : memref<3x18x18xf32, #tpu.memory_space<vmem>>, vector<1x16x16xf32>
    %389 = vector.shape_cast %388 : vector<1x16x16xf32> to vector<16x16xf32>
    %c21 = arith.constant 21 : index
    %390 = memref.load %arg2[%c21] : memref<108xf32, #tpu.memory_space<smem>>
    %391 = vector.broadcast %390 : f32 to vector<16x16xf32>
    %392 = arith.mulf %391, %389 : vector<16x16xf32>
    %393 = arith.addf %375, %392 : vector<16x16xf32>
    %c48 = arith.constant 48 : index
    %394 = memref.load %arg2[%c48] : memref<108xf32, #tpu.memory_space<smem>>
    %395 = vector.broadcast %394 : f32 to vector<16x16xf32>
    %396 = arith.mulf %395, %389 : vector<16x16xf32>
    %397 = arith.addf %379, %396 : vector<16x16xf32>
    %c75 = arith.constant 75 : index
    %398 = memref.load %arg2[%c75] : memref<108xf32, #tpu.memory_space<smem>>
    %399 = vector.broadcast %398 : f32 to vector<16x16xf32>
    %400 = arith.mulf %399, %389 : vector<16x16xf32>
    %401 = arith.addf %383, %400 : vector<16x16xf32>
    %c102 = arith.constant 102 : index
    %402 = memref.load %arg2[%c102] : memref<108xf32, #tpu.memory_space<smem>>
    %403 = vector.broadcast %402 : f32 to vector<16x16xf32>
    %404 = arith.mulf %403, %389 : vector<16x16xf32>
    %405 = arith.addf %387, %404 : vector<16x16xf32>
    %c2_80 = arith.constant 2 : index
    %c1_81 = arith.constant 1 : index
    %c1_82 = arith.constant 1 : index
    %406 = vector.load %arg8[%c2_80, %c1_81, %c1_82] : memref<3x18x18xf32, #tpu.memory_space<vmem>>, vector<1x16x16xf32>
    %407 = vector.shape_cast %406 : vector<1x16x16xf32> to vector<16x16xf32>
    %c22 = arith.constant 22 : index
    %408 = memref.load %arg2[%c22] : memref<108xf32, #tpu.memory_space<smem>>
    %409 = vector.broadcast %408 : f32 to vector<16x16xf32>
    %410 = arith.mulf %409, %407 : vector<16x16xf32>
    %411 = arith.addf %393, %410 : vector<16x16xf32>
    %c49 = arith.constant 49 : index
    %412 = memref.load %arg2[%c49] : memref<108xf32, #tpu.memory_space<smem>>
    %413 = vector.broadcast %412 : f32 to vector<16x16xf32>
    %414 = arith.mulf %413, %407 : vector<16x16xf32>
    %415 = arith.addf %397, %414 : vector<16x16xf32>
    %c76 = arith.constant 76 : index
    %416 = memref.load %arg2[%c76] : memref<108xf32, #tpu.memory_space<smem>>
    %417 = vector.broadcast %416 : f32 to vector<16x16xf32>
    %418 = arith.mulf %417, %407 : vector<16x16xf32>
    %419 = arith.addf %401, %418 : vector<16x16xf32>
    %c103 = arith.constant 103 : index
    %420 = memref.load %arg2[%c103] : memref<108xf32, #tpu.memory_space<smem>>
    %421 = vector.broadcast %420 : f32 to vector<16x16xf32>
    %422 = arith.mulf %421, %407 : vector<16x16xf32>
    %423 = arith.addf %405, %422 : vector<16x16xf32>
    %c2_83 = arith.constant 2 : index
    %c1_84 = arith.constant 1 : index
    %c2_85 = arith.constant 2 : index
    %424 = vector.load %arg8[%c2_83, %c1_84, %c2_85] : memref<3x18x18xf32, #tpu.memory_space<vmem>>, vector<1x16x16xf32>
    %425 = vector.shape_cast %424 : vector<1x16x16xf32> to vector<16x16xf32>
    %c23 = arith.constant 23 : index
    %426 = memref.load %arg2[%c23] : memref<108xf32, #tpu.memory_space<smem>>
    %427 = vector.broadcast %426 : f32 to vector<16x16xf32>
    %428 = arith.mulf %427, %425 : vector<16x16xf32>
    %429 = arith.addf %411, %428 : vector<16x16xf32>
    %c50 = arith.constant 50 : index
    %430 = memref.load %arg2[%c50] : memref<108xf32, #tpu.memory_space<smem>>
    %431 = vector.broadcast %430 : f32 to vector<16x16xf32>
    %432 = arith.mulf %431, %425 : vector<16x16xf32>
    %433 = arith.addf %415, %432 : vector<16x16xf32>
    %c77 = arith.constant 77 : index
    %434 = memref.load %arg2[%c77] : memref<108xf32, #tpu.memory_space<smem>>
    %435 = vector.broadcast %434 : f32 to vector<16x16xf32>
    %436 = arith.mulf %435, %425 : vector<16x16xf32>
    %437 = arith.addf %419, %436 : vector<16x16xf32>
    %c104 = arith.constant 104 : index
    %438 = memref.load %arg2[%c104] : memref<108xf32, #tpu.memory_space<smem>>
    %439 = vector.broadcast %438 : f32 to vector<16x16xf32>
    %440 = arith.mulf %439, %425 : vector<16x16xf32>
    %441 = arith.addf %423, %440 : vector<16x16xf32>
    %c2_86 = arith.constant 2 : index
    %c2_87 = arith.constant 2 : index
    %c0_88 = arith.constant 0 : index
    %442 = vector.load %arg8[%c2_86, %c2_87, %c0_88] : memref<3x18x18xf32, #tpu.memory_space<vmem>>, vector<1x16x16xf32>
    %443 = vector.shape_cast %442 : vector<1x16x16xf32> to vector<16x16xf32>
    %c24 = arith.constant 24 : index
    %444 = memref.load %arg2[%c24] : memref<108xf32, #tpu.memory_space<smem>>
    %445 = vector.broadcast %444 : f32 to vector<16x16xf32>
    %446 = arith.mulf %445, %443 : vector<16x16xf32>
    %447 = arith.addf %429, %446 : vector<16x16xf32>
    %c51 = arith.constant 51 : index
    %448 = memref.load %arg2[%c51] : memref<108xf32, #tpu.memory_space<smem>>
    %449 = vector.broadcast %448 : f32 to vector<16x16xf32>
    %450 = arith.mulf %449, %443 : vector<16x16xf32>
    %451 = arith.addf %433, %450 : vector<16x16xf32>
    %c78 = arith.constant 78 : index
    %452 = memref.load %arg2[%c78] : memref<108xf32, #tpu.memory_space<smem>>
    %453 = vector.broadcast %452 : f32 to vector<16x16xf32>
    %454 = arith.mulf %453, %443 : vector<16x16xf32>
    %455 = arith.addf %437, %454 : vector<16x16xf32>
    %c105 = arith.constant 105 : index
    %456 = memref.load %arg2[%c105] : memref<108xf32, #tpu.memory_space<smem>>
    %457 = vector.broadcast %456 : f32 to vector<16x16xf32>
    %458 = arith.mulf %457, %443 : vector<16x16xf32>
    %459 = arith.addf %441, %458 : vector<16x16xf32>
    %c2_89 = arith.constant 2 : index
    %c2_90 = arith.constant 2 : index
    %c1_91 = arith.constant 1 : index
    %460 = vector.load %arg8[%c2_89, %c2_90, %c1_91] : memref<3x18x18xf32, #tpu.memory_space<vmem>>, vector<1x16x16xf32>
    %461 = vector.shape_cast %460 : vector<1x16x16xf32> to vector<16x16xf32>
    %c25 = arith.constant 25 : index
    %462 = memref.load %arg2[%c25] : memref<108xf32, #tpu.memory_space<smem>>
    %463 = vector.broadcast %462 : f32 to vector<16x16xf32>
    %464 = arith.mulf %463, %461 : vector<16x16xf32>
    %465 = arith.addf %447, %464 : vector<16x16xf32>
    %c52 = arith.constant 52 : index
    %466 = memref.load %arg2[%c52] : memref<108xf32, #tpu.memory_space<smem>>
    %467 = vector.broadcast %466 : f32 to vector<16x16xf32>
    %468 = arith.mulf %467, %461 : vector<16x16xf32>
    %469 = arith.addf %451, %468 : vector<16x16xf32>
    %c79 = arith.constant 79 : index
    %470 = memref.load %arg2[%c79] : memref<108xf32, #tpu.memory_space<smem>>
    %471 = vector.broadcast %470 : f32 to vector<16x16xf32>
    %472 = arith.mulf %471, %461 : vector<16x16xf32>
    %473 = arith.addf %455, %472 : vector<16x16xf32>
    %c106 = arith.constant 106 : index
    %474 = memref.load %arg2[%c106] : memref<108xf32, #tpu.memory_space<smem>>
    %475 = vector.broadcast %474 : f32 to vector<16x16xf32>
    %476 = arith.mulf %475, %461 : vector<16x16xf32>
    %477 = arith.addf %459, %476 : vector<16x16xf32>
    %c2_92 = arith.constant 2 : index
    %c2_93 = arith.constant 2 : index
    %c2_94 = arith.constant 2 : index
    %478 = vector.load %arg8[%c2_92, %c2_93, %c2_94] : memref<3x18x18xf32, #tpu.memory_space<vmem>>, vector<1x16x16xf32>
    %479 = vector.shape_cast %478 : vector<1x16x16xf32> to vector<16x16xf32>
    %c26 = arith.constant 26 : index
    %480 = memref.load %arg2[%c26] : memref<108xf32, #tpu.memory_space<smem>>
    %481 = vector.broadcast %480 : f32 to vector<16x16xf32>
    %482 = arith.mulf %481, %479 : vector<16x16xf32>
    %483 = arith.addf %465, %482 : vector<16x16xf32>
    %c53 = arith.constant 53 : index
    %484 = memref.load %arg2[%c53] : memref<108xf32, #tpu.memory_space<smem>>
    %485 = vector.broadcast %484 : f32 to vector<16x16xf32>
    %486 = arith.mulf %485, %479 : vector<16x16xf32>
    %487 = arith.addf %469, %486 : vector<16x16xf32>
    %c80 = arith.constant 80 : index
    %488 = memref.load %arg2[%c80] : memref<108xf32, #tpu.memory_space<smem>>
    %489 = vector.broadcast %488 : f32 to vector<16x16xf32>
    %490 = arith.mulf %489, %479 : vector<16x16xf32>
    %491 = arith.addf %473, %490 : vector<16x16xf32>
    %c107 = arith.constant 107 : index
    %492 = memref.load %arg2[%c107] : memref<108xf32, #tpu.memory_space<smem>>
    %493 = vector.broadcast %492 : f32 to vector<16x16xf32>
    %494 = arith.mulf %493, %479 : vector<16x16xf32>
    %495 = arith.addf %477, %494 : vector<16x16xf32>
    %c0_95 = arith.constant 0 : index
    %496 = memref.load %arg6[%c0_95] : memref<2xf32, #tpu.memory_space<smem>>
    %c1_96 = arith.constant 1 : index
    %497 = memref.load %arg6[%c1_96] : memref<2xf32, #tpu.memory_space<smem>>
    %c0_97 = arith.constant 0 : index
    %498 = memref.load %arg3[%c0_97] : memref<4xf32, #tpu.memory_space<smem>>
    %499 = vector.broadcast %498 : f32 to vector<16x16xf32>
    %500 = arith.mulf %483, %499 : vector<16x16xf32>
    %c0_98 = arith.constant 0 : index
    %501 = memref.load %arg4[%c0_98] : memref<4xf32, #tpu.memory_space<smem>>
    %502 = vector.broadcast %501 : f32 to vector<16x16xf32>
    %503 = arith.addf %500, %502 : vector<16x16xf32>
    %cst_99 = arith.constant 0.000000e+00 : f32
    %504 = vector.broadcast %cst_99 : f32 to vector<16x16xf32>
    %505 = arith.maximumf %503, %504 : vector<16x16xf32>
    %506 = vector.extract_strided_slice %505 {offsets = [0, 0], sizes = [16, 15], strides = [1, 1]} : vector<16x16xf32> to vector<16x15xf32>
    %507 = vector.extract_strided_slice %505 {offsets = [0, 1], sizes = [16, 15], strides = [1, 1]} : vector<16x16xf32> to vector<16x15xf32>
    %508 = arith.maximumf %506, %507 : vector<16x15xf32>
    %509 = vector.extract_strided_slice %508 {offsets = [0, 0], sizes = [15, 15], strides = [1, 1]} : vector<16x15xf32> to vector<15x15xf32>
    %510 = vector.extract_strided_slice %508 {offsets = [1, 0], sizes = [15, 15], strides = [1, 1]} : vector<16x15xf32> to vector<15x15xf32>
    %511 = arith.maximumf %509, %510 : vector<15x15xf32>
    %c0_100 = arith.constant 0 : index
    %c0_101 = arith.constant 0 : index
    %c0_102 = arith.constant 0 : index
    %c0_103 = arith.constant 0 : index
    %512 = vector.load %arg5[%c0_100, %c0_101, %c0_102, %c0_103] : memref<2x4x15x15xf32, #tpu.memory_space<vmem>>, vector<1x1x15x15xf32>
    %513 = vector.shape_cast %512 : vector<1x1x15x15xf32> to vector<15x15xf32>
    %514 = arith.mulf %513, %511 : vector<15x15xf32>
    %515 = vector.shape_cast %514 : vector<15x15xf32> to vector<1x15x15xf32>
    %cst_104 = arith.constant dense<0.000000e+00> : vector<1xf32>
    %516 = vector.multi_reduction <add>, %515, %cst_104 [1, 2] : vector<1x15x15xf32> to vector<1xf32>
    %517 = vector.shape_cast %516 : vector<1xf32> to vector<1x1x1xf32>
    %518 = vector.extract %517[0, 0, 0] : f32 from vector<1x1x1xf32>
    %519 = arith.addf %496, %518 : f32
    %c1_105 = arith.constant 1 : index
    %c0_106 = arith.constant 0 : index
    %c0_107 = arith.constant 0 : index
    %c0_108 = arith.constant 0 : index
    %520 = vector.load %arg5[%c1_105, %c0_106, %c0_107, %c0_108] : memref<2x4x15x15xf32, #tpu.memory_space<vmem>>, vector<1x1x15x15xf32>
    %521 = vector.shape_cast %520 : vector<1x1x15x15xf32> to vector<15x15xf32>
    %522 = arith.mulf %521, %511 : vector<15x15xf32>
    %523 = vector.shape_cast %522 : vector<15x15xf32> to vector<1x15x15xf32>
    %cst_109 = arith.constant dense<0.000000e+00> : vector<1xf32>
    %524 = vector.multi_reduction <add>, %523, %cst_109 [1, 2] : vector<1x15x15xf32> to vector<1xf32>
    %525 = vector.shape_cast %524 : vector<1xf32> to vector<1x1x1xf32>
    %526 = vector.extract %525[0, 0, 0] : f32 from vector<1x1x1xf32>
    %527 = arith.addf %497, %526 : f32
    %c1_110 = arith.constant 1 : index
    %528 = memref.load %arg3[%c1_110] : memref<4xf32, #tpu.memory_space<smem>>
    %529 = vector.broadcast %528 : f32 to vector<16x16xf32>
    %530 = arith.mulf %487, %529 : vector<16x16xf32>
    %c1_111 = arith.constant 1 : index
    %531 = memref.load %arg4[%c1_111] : memref<4xf32, #tpu.memory_space<smem>>
    %532 = vector.broadcast %531 : f32 to vector<16x16xf32>
    %533 = arith.addf %530, %532 : vector<16x16xf32>
    %cst_112 = arith.constant 0.000000e+00 : f32
    %534 = vector.broadcast %cst_112 : f32 to vector<16x16xf32>
    %535 = arith.maximumf %533, %534 : vector<16x16xf32>
    %536 = vector.extract_strided_slice %535 {offsets = [0, 0], sizes = [16, 15], strides = [1, 1]} : vector<16x16xf32> to vector<16x15xf32>
    %537 = vector.extract_strided_slice %535 {offsets = [0, 1], sizes = [16, 15], strides = [1, 1]} : vector<16x16xf32> to vector<16x15xf32>
    %538 = arith.maximumf %536, %537 : vector<16x15xf32>
    %539 = vector.extract_strided_slice %538 {offsets = [0, 0], sizes = [15, 15], strides = [1, 1]} : vector<16x15xf32> to vector<15x15xf32>
    %540 = vector.extract_strided_slice %538 {offsets = [1, 0], sizes = [15, 15], strides = [1, 1]} : vector<16x15xf32> to vector<15x15xf32>
    %541 = arith.maximumf %539, %540 : vector<15x15xf32>
    %c0_113 = arith.constant 0 : index
    %c1_114 = arith.constant 1 : index
    %c0_115 = arith.constant 0 : index
    %c0_116 = arith.constant 0 : index
    %542 = vector.load %arg5[%c0_113, %c1_114, %c0_115, %c0_116] : memref<2x4x15x15xf32, #tpu.memory_space<vmem>>, vector<1x1x15x15xf32>
    %543 = vector.shape_cast %542 : vector<1x1x15x15xf32> to vector<15x15xf32>
    %544 = arith.mulf %543, %541 : vector<15x15xf32>
    %545 = vector.shape_cast %544 : vector<15x15xf32> to vector<1x15x15xf32>
    %cst_117 = arith.constant dense<0.000000e+00> : vector<1xf32>
    %546 = vector.multi_reduction <add>, %545, %cst_117 [1, 2] : vector<1x15x15xf32> to vector<1xf32>
    %547 = vector.shape_cast %546 : vector<1xf32> to vector<1x1x1xf32>
    %548 = vector.extract %547[0, 0, 0] : f32 from vector<1x1x1xf32>
    %549 = arith.addf %519, %548 : f32
    %c1_118 = arith.constant 1 : index
    %c1_119 = arith.constant 1 : index
    %c0_120 = arith.constant 0 : index
    %c0_121 = arith.constant 0 : index
    %550 = vector.load %arg5[%c1_118, %c1_119, %c0_120, %c0_121] : memref<2x4x15x15xf32, #tpu.memory_space<vmem>>, vector<1x1x15x15xf32>
    %551 = vector.shape_cast %550 : vector<1x1x15x15xf32> to vector<15x15xf32>
    %552 = arith.mulf %551, %541 : vector<15x15xf32>
    %553 = vector.shape_cast %552 : vector<15x15xf32> to vector<1x15x15xf32>
    %cst_122 = arith.constant dense<0.000000e+00> : vector<1xf32>
    %554 = vector.multi_reduction <add>, %553, %cst_122 [1, 2] : vector<1x15x15xf32> to vector<1xf32>
    %555 = vector.shape_cast %554 : vector<1xf32> to vector<1x1x1xf32>
    %556 = vector.extract %555[0, 0, 0] : f32 from vector<1x1x1xf32>
    %557 = arith.addf %527, %556 : f32
    %c2_123 = arith.constant 2 : index
    %558 = memref.load %arg3[%c2_123] : memref<4xf32, #tpu.memory_space<smem>>
    %559 = vector.broadcast %558 : f32 to vector<16x16xf32>
    %560 = arith.mulf %491, %559 : vector<16x16xf32>
    %c2_124 = arith.constant 2 : index
    %561 = memref.load %arg4[%c2_124] : memref<4xf32, #tpu.memory_space<smem>>
    %562 = vector.broadcast %561 : f32 to vector<16x16xf32>
    %563 = arith.addf %560, %562 : vector<16x16xf32>
    %cst_125 = arith.constant 0.000000e+00 : f32
    %564 = vector.broadcast %cst_125 : f32 to vector<16x16xf32>
    %565 = arith.maximumf %563, %564 : vector<16x16xf32>
    %566 = vector.extract_strided_slice %565 {offsets = [0, 0], sizes = [16, 15], strides = [1, 1]} : vector<16x16xf32> to vector<16x15xf32>
    %567 = vector.extract_strided_slice %565 {offsets = [0, 1], sizes = [16, 15], strides = [1, 1]} : vector<16x16xf32> to vector<16x15xf32>
    %568 = arith.maximumf %566, %567 : vector<16x15xf32>
    %569 = vector.extract_strided_slice %568 {offsets = [0, 0], sizes = [15, 15], strides = [1, 1]} : vector<16x15xf32> to vector<15x15xf32>
    %570 = vector.extract_strided_slice %568 {offsets = [1, 0], sizes = [15, 15], strides = [1, 1]} : vector<16x15xf32> to vector<15x15xf32>
    %571 = arith.maximumf %569, %570 : vector<15x15xf32>
    %c0_126 = arith.constant 0 : index
    %c2_127 = arith.constant 2 : index
    %c0_128 = arith.constant 0 : index
    %c0_129 = arith.constant 0 : index
    %572 = vector.load %arg5[%c0_126, %c2_127, %c0_128, %c0_129] : memref<2x4x15x15xf32, #tpu.memory_space<vmem>>, vector<1x1x15x15xf32>
    %573 = vector.shape_cast %572 : vector<1x1x15x15xf32> to vector<15x15xf32>
    %574 = arith.mulf %573, %571 : vector<15x15xf32>
    %575 = vector.shape_cast %574 : vector<15x15xf32> to vector<1x15x15xf32>
    %cst_130 = arith.constant dense<0.000000e+00> : vector<1xf32>
    %576 = vector.multi_reduction <add>, %575, %cst_130 [1, 2] : vector<1x15x15xf32> to vector<1xf32>
    %577 = vector.shape_cast %576 : vector<1xf32> to vector<1x1x1xf32>
    %578 = vector.extract %577[0, 0, 0] : f32 from vector<1x1x1xf32>
    %579 = arith.addf %549, %578 : f32
    %c1_131 = arith.constant 1 : index
    %c2_132 = arith.constant 2 : index
    %c0_133 = arith.constant 0 : index
    %c0_134 = arith.constant 0 : index
    %580 = vector.load %arg5[%c1_131, %c2_132, %c0_133, %c0_134] : memref<2x4x15x15xf32, #tpu.memory_space<vmem>>, vector<1x1x15x15xf32>
    %581 = vector.shape_cast %580 : vector<1x1x15x15xf32> to vector<15x15xf32>
    %582 = arith.mulf %581, %571 : vector<15x15xf32>
    %583 = vector.shape_cast %582 : vector<15x15xf32> to vector<1x15x15xf32>
    %cst_135 = arith.constant dense<0.000000e+00> : vector<1xf32>
    %584 = vector.multi_reduction <add>, %583, %cst_135 [1, 2] : vector<1x15x15xf32> to vector<1xf32>
    %585 = vector.shape_cast %584 : vector<1xf32> to vector<1x1x1xf32>
    %586 = vector.extract %585[0, 0, 0] : f32 from vector<1x1x1xf32>
    %587 = arith.addf %557, %586 : f32
    %c3_136 = arith.constant 3 : index
    %588 = memref.load %arg3[%c3_136] : memref<4xf32, #tpu.memory_space<smem>>
    %589 = vector.broadcast %588 : f32 to vector<16x16xf32>
    %590 = arith.mulf %495, %589 : vector<16x16xf32>
    %c3_137 = arith.constant 3 : index
    %591 = memref.load %arg4[%c3_137] : memref<4xf32, #tpu.memory_space<smem>>
    %592 = vector.broadcast %591 : f32 to vector<16x16xf32>
    %593 = arith.addf %590, %592 : vector<16x16xf32>
    %cst_138 = arith.constant 0.000000e+00 : f32
    %594 = vector.broadcast %cst_138 : f32 to vector<16x16xf32>
    %595 = arith.maximumf %593, %594 : vector<16x16xf32>
    %596 = vector.extract_strided_slice %595 {offsets = [0, 0], sizes = [16, 15], strides = [1, 1]} : vector<16x16xf32> to vector<16x15xf32>
    %597 = vector.extract_strided_slice %595 {offsets = [0, 1], sizes = [16, 15], strides = [1, 1]} : vector<16x16xf32> to vector<16x15xf32>
    %598 = arith.maximumf %596, %597 : vector<16x15xf32>
    %599 = vector.extract_strided_slice %598 {offsets = [0, 0], sizes = [15, 15], strides = [1, 1]} : vector<16x15xf32> to vector<15x15xf32>
    %600 = vector.extract_strided_slice %598 {offsets = [1, 0], sizes = [15, 15], strides = [1, 1]} : vector<16x15xf32> to vector<15x15xf32>
    %601 = arith.maximumf %599, %600 : vector<15x15xf32>
    %c0_139 = arith.constant 0 : index
    %c3_140 = arith.constant 3 : index
    %c0_141 = arith.constant 0 : index
    %c0_142 = arith.constant 0 : index
    %602 = vector.load %arg5[%c0_139, %c3_140, %c0_141, %c0_142] : memref<2x4x15x15xf32, #tpu.memory_space<vmem>>, vector<1x1x15x15xf32>
    %603 = vector.shape_cast %602 : vector<1x1x15x15xf32> to vector<15x15xf32>
    %604 = arith.mulf %603, %601 : vector<15x15xf32>
    %605 = vector.shape_cast %604 : vector<15x15xf32> to vector<1x15x15xf32>
    %cst_143 = arith.constant dense<0.000000e+00> : vector<1xf32>
    %606 = vector.multi_reduction <add>, %605, %cst_143 [1, 2] : vector<1x15x15xf32> to vector<1xf32>
    %607 = vector.shape_cast %606 : vector<1xf32> to vector<1x1x1xf32>
    %608 = vector.extract %607[0, 0, 0] : f32 from vector<1x1x1xf32>
    %609 = arith.addf %579, %608 : f32
    %c1_144 = arith.constant 1 : index
    %c3_145 = arith.constant 3 : index
    %c0_146 = arith.constant 0 : index
    %c0_147 = arith.constant 0 : index
    %610 = vector.load %arg5[%c1_144, %c3_145, %c0_146, %c0_147] : memref<2x4x15x15xf32, #tpu.memory_space<vmem>>, vector<1x1x15x15xf32>
    %611 = vector.shape_cast %610 : vector<1x1x15x15xf32> to vector<15x15xf32>
    %612 = arith.mulf %611, %601 : vector<15x15xf32>
    %613 = vector.shape_cast %612 : vector<15x15xf32> to vector<1x15x15xf32>
    %cst_148 = arith.constant dense<0.000000e+00> : vector<1xf32>
    %614 = vector.multi_reduction <add>, %613, %cst_148 [1, 2] : vector<1x15x15xf32> to vector<1xf32>
    %615 = vector.shape_cast %614 : vector<1xf32> to vector<1x1x1xf32>
    %616 = vector.extract %615[0, 0, 0] : f32 from vector<1x1x1xf32>
    %617 = arith.addf %587, %616 : f32
    %618 = tpu.iota {dimensions = array<i32: 2>} : vector<1x1x128xi32>
    %cst_149 = arith.constant 0.000000e+00 : f32
    %619 = vector.broadcast %cst_149 : f32 to vector<1x1x128xf32>
    %c0_i32 = arith.constant 0 : i32
    %620 = vector.broadcast %c0_i32 : i32 to vector<1x1x128xi32>
    %621 = arith.cmpi eq, %618, %620 : vector<1x1x128xi32>
    %622 = vector.broadcast %609 : f32 to vector<1x1x128xf32>
    %623 = arith.select %621, %622, %619 : vector<1x1x128xi1>, vector<1x1x128xf32>
    %c1_i32 = arith.constant 1 : i32
    %624 = vector.broadcast %c1_i32 : i32 to vector<1x1x128xi32>
    %625 = arith.cmpi eq, %618, %624 : vector<1x1x128xi32>
    %626 = vector.broadcast %617 : f32 to vector<1x1x128xf32>
    %627 = arith.select %625, %626, %623 : vector<1x1x128xi1>, vector<1x1x128xf32>
    %c0_150 = arith.constant 0 : index
    %c0_151 = arith.constant 0 : index
    %c0_152 = arith.constant 0 : index
    %628 = vector.load %arg7[%c0_150, %c0_151, %c0_152] : memref<1x1x128xf32, #tpu.memory_space<vmem>>, vector<1x1x128xf32>
    tpu.vector_store %arg7[%c0_150, %c0_151, %c0_152], %627 {strides = array<i32>} : memref<1x1x128xf32, #tpu.memory_space<vmem>>, vector<1x1x128xf32>,
    return
  }
  func.func @transform_0(%arg0: i32) -> (i32, i32, i32, i32) {
    %c0_i32 = arith.constant 0 : i32
    %c0_i32_0 = arith.constant 0 : i32
    %c0_i32_1 = arith.constant 0 : i32
    %c0_i32_2 = arith.constant 0 : i32
    return %arg0, %c0_i32, %c0_i32_0, %c0_i32_1 : i32, i32, i32, i32
  }
  func.func @transform_1(%arg0: i32) -> i32 {
    %c0_i32 = arith.constant 0 : i32
    %c0_i32_0 = arith.constant 0 : i32
    return %c0_i32 : i32
  }
  func.func @transform_2(%arg0: i32) -> i32 {
    %c0_i32 = arith.constant 0 : i32
    %c0_i32_0 = arith.constant 0 : i32
    return %c0_i32 : i32
  }
  func.func @transform_3(%arg0: i32) -> i32 {
    %c0_i32 = arith.constant 0 : i32
    %c0_i32_0 = arith.constant 0 : i32
    return %c0_i32 : i32
  }
  func.func @transform_4(%arg0: i32) -> (i32, i32, i32, i32) {
    %c0_i32 = arith.constant 0 : i32
    %c0_i32_0 = arith.constant 0 : i32
    %c0_i32_1 = arith.constant 0 : i32
    %c0_i32_2 = arith.constant 0 : i32
    %c0_i32_3 = arith.constant 0 : i32
    return %c0_i32, %c0_i32_0, %c0_i32_1, %c0_i32_2 : i32, i32, i32, i32
  }
  func.func @transform_5(%arg0: i32) -> i32 {
    %c0_i32 = arith.constant 0 : i32
    %c0_i32_0 = arith.constant 0 : i32
    return %c0_i32 : i32
  }
  func.func @transform_6(%arg0: i32) -> (i32, i32, i32) {
    %c0_i32 = arith.constant 0 : i32
    %c0_i32_0 = arith.constant 0 : i32
    %c0_i32_1 = arith.constant 0 : i32
    return %arg0, %c0_i32, %c0_i32_0 : i32, i32, i32
  }
}

</mosaic_0001>

<llo_original>
// kernel: one_conv_layer_net.1
$region0: #{one_conv_layer_net.1}
  #allocation0 [shape = 'u32[]', space=smem, size = 0x4, offset = 0x4, fixed_abs, tag = 'smem constant byte address 0x4 - core index']
  #allocation1 [shape = 'u32[72,128]{1,0:T(1,128)}', space=vmem, size = 0x9000, scoped, tag = 'internal scratch']
  #allocation2 [shape = 'f32[3,18,18]{2,1,0:T(8,128)}', space=vmem, size = 0x9000, scoped, tag = 'scratch operand']
  %s0 = inlined_call_operand.vmem [shape: bf16[2,3,16,16], index: 0, kind: input, shape index: {}]
  %s1 = inlined_call_operand.vmem [shape: f32[108], index: 1, kind: input, shape index: {}]
  %s2 = inlined_call_operand.vmem [shape: f32[4], index: 2, kind: input, shape index: {}]
  %s3 = inlined_call_operand.vmem [shape: f32[4], index: 3, kind: input, shape index: {}]
  %s4 = inlined_call_operand.vmem [shape: f32[2,4,15,15], index: 4, kind: input, shape index: {}]
  %s5 = inlined_call_operand.vmem [shape: f32[2], index: 5, kind: input, shape index: {}]
  %s6 = inlined_call_operand.hbm [shape: f32[2,1,128], index: 6, kind: output, shape index: {}]
  %s7 = sld [smem:[#allocation0]]
  $region73: #{one_conv_layer_net.1} parent=0
    _
  %s9 = ssub.s32 1, %s7
  %s10 = scalar_select 0, %s9, %s7
  $region1: #{one_conv_layer_net.1} parent=0
    #allocation3 [shape = 'u8[512]{0}', space=smem, size = 0x200, scoped, tag = 'input window, operand 1, single buffered']
    #allocation4 [shape = 's32[2]{0}', space=sflag, size = 0x8, scoped, tag = 'scoped memory for one_conv_layer_net.1']
    #allocation5 [shape = 's32[2]{0}', space=sflag, size = 0x8, scoped, tag = 'scoped memory for one_conv_layer_net.1']
    #allocation6 [shape = 'u8[512]{0}', space=smem, size = 0x200, scoped, tag = 'input window, operand 2, single buffered']
    #allocation7 [shape = 's32[1]{0}', space=sflag, size = 0x4, scoped, tag = 'scoped memory for one_conv_layer_net.1']
    #allocation8 [shape = 'u8[512]{0}', space=smem, size = 0x200, scoped, tag = 'input window, operand 3, single buffered']
    #allocation9 [shape = 'u8[512]{0}', space=smem, size = 0x200, scoped, tag = 'input window, operand 5, single buffered']
    #allocation10 [shape = 's32[1]{0}', space=sflag, size = 0x4, scoped, tag = 'scoped memory for one_conv_layer_net.1']
    #allocation11 [shape = 'u8[1024]{0}', space=vmem, size = 0x400, scoped, tag = 'output window, operand 0']
    %11 = vsyncpa [#allocation5], 0
    %12 = vsyncpa [#allocation7], 0
    %13 = vsyncpa [#allocation10], 0
    %14 = vsyncpa [#allocation4], 0
    %s15 = scalar_lea.sflag [#allocation4], 1
    %16 = vsyncpa %s15, 0
    loop: start=0, step=1, limit=4
    $region2: #{one_conv_layer_net.1} parent=1 // loop_pre_header
      _
    $region3: #{one_conv_layer_net.1} parent=1 // loop_header
      %s18 = sphi 0, %s22
      %p19 = scmp.ge.s32.totalorder %s18, 4
      %s28 = sphi 0, %s30
      %s31 = sphi 0, %s28
      %s32 = sphi 0, %s31
      %s48 = sphi 0, %s32
      %s52 = sphi 0, %s52
      %s54 = sphi 0, %s52
      %s55 = sphi 0, %s54
      %s69 = sphi 0, %s55
      %s73 = sphi 0, %s73
      %s75 = sphi 0, %s73
      %s76 = sphi 0, %s75
      %s90 = sphi 0, %s76
      %s94 = sphi 0, %s94
      %s96 = sphi 0, %s94
      %s97 = sphi 0, %s96
      %s111 = sphi 0, %s97
      %s115 = sphi 0, %s115
      %s117 = sphi 0, %s115
      %s118 = sphi 0, %s117
      %s132 = sphi 0, %s118
      %s136 = sphi 0, %s136
      %s138 = sphi 0, %s136
      %s139 = sphi 0, %s138
      %s153 = sphi 0, %s139
      %s159 = sphi 0, %s161
      %s162 = sphi 0, %s159
      %s163 = sphi 0, %s162
      %s179 = sphi 0, %s163
    $region4: #{one_conv_layer_net.1} parent=1 // loop_header_branch
      %21 = sbr.rel (%p19) target = $region8
    $region5: #{one_conv_layer_net.1} parent=1 // loop_body
      %s23 = ssub.s32 %s18, 1
      %s24 = ssub.s32 %s18, 2
      %s25 = sadd.s32 %s18, 1
      %s26 = ssub.s32 %s18, %s25
      %p27 = scmp.eq.s32.totalorder %s26, 0
      %s29 = sadd.s32 %s28, 1
      %s30 = scalar_select %p27, %s28, %s29
      %p33 = pneg %p27
      %p34 = scmp.eq.s32.totalorder %s18, 1
      %p35 = por %p33, %p34
      %p36 = scmp.ne.s32.totalorder %s28, %s31
      %p37 = scmp.eq.s32.totalorder %s18, 0
      %p38 = por %p36, %p37
      %p39 = scmp.ne.s32.totalorder %s28, %s31
      %p40 = scmp.eq.s32.totalorder %s23, 1
      %p41 = por %p39, %p40
      %p42 = scmp.ne.s32.totalorder %s31, %s32
      %p43 = scmp.eq.s32.totalorder %s23, 0
      %p44 = por %p42, %p43
      %p45 = scmp.ne.s32.totalorder %s31, %s32
      %p46 = scmp.eq.s32.totalorder %s24, 1
      %p47 = por %p45, %p46
      %p49 = scmp.ne.s32.totalorder %s32, %s48
      %p50 = scmp.eq.s32.totalorder %s24, 0
      %p51 = por %p49, %p50
      %s53 = sadd.s32 %s52, 1
      %p56 = scmp.eq.s32.totalorder %s18, 1
      %p57 = scmp.ne.s32.totalorder %s52, %s54
      %p58 = scmp.eq.s32.totalorder %s18, 0
      %p59 = por %p57, %p58
      %p60 = scmp.ne.s32.totalorder %s52, %s54
      %p61 = scmp.eq.s32.totalorder %s23, 1
      %p62 = por %p60, %p61
      %p63 = scmp.ne.s32.totalorder %s54, %s55
      %p64 = scmp.eq.s32.totalorder %s23, 0
      %p65 = por %p63, %p64
      %p66 = scmp.ne.s32.totalorder %s54, %s55
      %p67 = scmp.eq.s32.totalorder %s24, 1
      %p68 = por %p66, %p67
      %p70 = scmp.ne.s32.totalorder %s55, %s69
      %p71 = scmp.eq.s32.totalorder %s24, 0
      %p72 = por %p70, %p71
      %s74 = sadd.s32 %s73, 1
      %p77 = scmp.eq.s32.totalorder %s18, 1
      %p78 = scmp.ne.s32.totalorder %s73, %s75
      %p79 = scmp.eq.s32.totalorder %s18, 0
      %p80 = por %p78, %p79
      %p81 = scmp.ne.s32.totalorder %s73, %s75
      %p82 = scmp.eq.s32.totalorder %s23, 1
      %p83 = por %p81, %p82
      %p84 = scmp.ne.s32.totalorder %s75, %s76
      %p85 = scmp.eq.s32.totalorder %s23, 0
      %p86 = por %p84, %p85
      %p87 = scmp.ne.s32.totalorder %s75, %s76
      %p88 = scmp.eq.s32.totalorder %s24, 1
      %p89 = por %p87, %p88
      %p91 = scmp.ne.s32.totalorder %s76, %s90
      %p92 = scmp.eq.s32.totalorder %s24, 0
      %p93 = por %p91, %p92
      %s95 = sadd.s32 %s94, 1
      %p98 = scmp.eq.s32.totalorder %s18, 1
      %p99 = scmp.ne.s32.totalorder %s94, %s96
      %p100 = scmp.eq.s32.totalorder %s18, 0
      %p101 = por %p99, %p100
      %p102 = scmp.ne.s32.totalorder %s94, %s96
      %p103 = scmp.eq.s32.totalorder %s23, 1
      %p104 = por %p102, %p103
      %p105 = scmp.ne.s32.totalorder %s96, %s97
      %p106 = scmp.eq.s32.totalorder %s23, 0
      %p107 = por %p105, %p106
      %p108 = scmp.ne.s32.totalorder %s96, %s97
      %p109 = scmp.eq.s32.totalorder %s24, 1
      %p110 = por %p108, %p109
      %p112 = scmp.ne.s32.totalorder %s97, %s111
      %p113 = scmp.eq.s32.totalorder %s24, 0
      %p114 = por %p112, %p113
      %s116 = sadd.s32 %s115, 1
      %p119 = scmp.eq.s32.totalorder %s18, 1
      %p120 = scmp.ne.s32.totalorder %s115, %s117
      %p121 = scmp.eq.s32.totalorder %s18, 0
      %p122 = por %p120, %p121
      %p123 = scmp.ne.s32.totalorder %s115, %s117
      %p124 = scmp.eq.s32.totalorder %s23, 1
      %p125 = por %p123, %p124
      %p126 = scmp.ne.s32.totalorder %s117, %s118
      %p127 = scmp.eq.s32.totalorder %s23, 0
      %p128 = por %p126, %p127
      %p129 = scmp.ne.s32.totalorder %s117, %s118
      %p130 = scmp.eq.s32.totalorder %s24, 1
      %p131 = por %p129, %p130
      %p133 = scmp.ne.s32.totalorder %s118, %s132
      %p134 = scmp.eq.s32.totalorder %s24, 0
      %p135 = por %p133, %p134
      %s137 = sadd.s32 %s136, 1
      %p140 = scmp.eq.s32.totalorder %s18, 1
      %p141 = scmp.ne.s32.totalorder %s136, %s138
      %p142 = scmp.eq.s32.totalorder %s18, 0
      %p143 = por %p141, %p142
      %p144 = scmp.ne.s32.totalorder %s136, %s138
      %p145 = scmp.eq.s32.totalorder %s23, 1
      %p146 = por %p144, %p145
      %p147 = scmp.ne.s32.totalorder %s138, %s139
      %p148 = scmp.eq.s32.totalorder %s23, 0
      %p149 = por %p147, %p148
      %p150 = scmp.ne.s32.totalorder %s138, %s139
      %p151 = scmp.eq.s32.totalorder %s24, 1
      %p152 = por %p150, %p151
      %p154 = scmp.ne.s32.totalorder %s139, %s153
      %p155 = scmp.eq.s32.totalorder %s24, 0
      %p156 = por %p154, %p155
      %s157 = ssub.s32 %s18, %s25
      %p158 = scmp.eq.s32.totalorder %s157, 0
      %s160 = sadd.s32 %s159, 1
      %s161 = scalar_select %p158, %s159, %s160
      %p164 = pneg %p158
      %p165 = scmp.eq.s32.totalorder %s18, 1
      %p166 = por %p164, %p165
      %p167 = scmp.ne.s32.totalorder %s159, %s162
      %p168 = scmp.eq.s32.totalorder %s18, 0
      %p169 = por %p167, %p168
      %p170 = scmp.ne.s32.totalorder %s159, %s162
      %p171 = scmp.eq.s32.totalorder %s23, 1
      %p172 = por %p170, %p171
      %p173 = scmp.ne.s32.totalorder %s162, %s163
      %p174 = scmp.eq.s32.totalorder %s23, 0
      %p175 = por %p173, %p174
      %p176 = scmp.ne.s32.totalorder %s162, %s163
      %p177 = scmp.eq.s32.totalorder %s24, 1
      %p178 = por %p176, %p177
      %p180 = scmp.ne.s32.totalorder %s163, %s179
      %p181 = scmp.eq.s32.totalorder %s24, 0
      %p182 = por %p180, %p181
      %p183 = scmp.le.s32.totalorder 1, %s18
      %p184 = scmp.lt.s32.totalorder %s18, 3
      %p185 = pnand %p183, %p184
      %p186 = pneg %p185
      // Predicated region
      $region9: #{one_conv_layer_net.1} parent=5 // pred_check
        _
      $region10: #{one_conv_layer_net.1} parent=5 // pred_check_branch
        %188 = sbr.rel (%p185) target = $region12
      $region11: #{one_conv_layer_net.1} parent=5 // pred_region
        %s189 = ssub.s32 %s18, 1
        // Predicated region
        $region13: #{one_conv_layer_net.1} parent=11 // pred_check
          %p190 = pneg %p65
        $region14: #{one_conv_layer_net.1} parent=11 // pred_check_branch
          %192 = sbr.rel (%p190) target = $region16
        $region15: #{one_conv_layer_net.1} parent=11 // pred_region
          %194 = vsyncadd [#allocation5], 0
          %s196 = sshll.u32 %s1, 4
          %s197 = int_to_ptr.vmem [resolvable:$true] %s196
          %199 = dma.vmem_to_smem %s197, 16, [#allocation3], [#allocation5]
        $region16: #{one_conv_layer_net.1} parent=11 // pred_fallthru
          _
        // Predicated region
        $region17: #{one_conv_layer_net.1} parent=11 // pred_check
          %p200 = pneg %p86
        $region18: #{one_conv_layer_net.1} parent=11 // pred_check_branch
          %202 = sbr.rel (%p200) target = $region20
        $region19: #{one_conv_layer_net.1} parent=11 // pred_region
          %204 = vsyncadd [#allocation7], 0
          %s206 = sshll.u32 %s2, 4
          %s207 = int_to_ptr.vmem [resolvable:$true] %s206
          %209 = dma.vmem_to_smem %s207, 16, [#allocation6], [#allocation7]
        $region20: #{one_conv_layer_net.1} parent=11 // pred_fallthru
          _
        // Predicated region
        $region21: #{one_conv_layer_net.1} parent=11 // pred_check
          %p210 = pneg %p107
        $region22: #{one_conv_layer_net.1} parent=11 // pred_check_branch
          %212 = sbr.rel (%p210) target = $region24
        $region23: #{one_conv_layer_net.1} parent=11 // pred_region
          %214 = vsyncadd [#allocation7], 0
          %s216 = sshll.u32 %s3, 4
          %s217 = int_to_ptr.vmem [resolvable:$true] %s216
          %219 = dma.vmem_to_smem %s217, 16, [#allocation8], [#allocation7]
        $region24: #{one_conv_layer_net.1} parent=11 // pred_fallthru
          _
        // Predicated region
        $region25: #{one_conv_layer_net.1} parent=11 // pred_check
          %p220 = pneg %p128
        $region26: #{one_conv_layer_net.1} parent=11 // pred_check_branch
          %222 = sbr.rel (%p220) target = $region28
        $region27: #{one_conv_layer_net.1} parent=11 // pred_region
          _
        $region28: #{one_conv_layer_net.1} parent=11 // pred_fallthru
          _
        // Predicated region
        $region29: #{one_conv_layer_net.1} parent=11 // pred_check
          %p223 = pneg %p149
        $region30: #{one_conv_layer_net.1} parent=11 // pred_check_branch
          %225 = sbr.rel (%p223) target = $region32
        $region31: #{one_conv_layer_net.1} parent=11 // pred_region
          %227 = vsyncadd [#allocation10], 0
          %s229 = sshll.u32 %s5, 4
          %s230 = int_to_ptr.vmem [resolvable:$true] %s229
          %232 = dma.vmem_to_smem %s230, 16, [#allocation9], [#allocation10]
        $region32: #{one_conv_layer_net.1} parent=11 // pred_fallthru
          _
      $region12: #{one_conv_layer_net.1} parent=5 // pred_fallthru
        _
      %p233 = scmp.lt.s32.totalorder %s18, 2
      // Predicated region
      $region33: #{one_conv_layer_net.1} parent=5 // pred_check
        %p234 = pneg %p233
      $region34: #{one_conv_layer_net.1} parent=5 // pred_check_branch
        %236 = sbr.rel (%p234) target = $region36
      $region35: #{one_conv_layer_net.1} parent=5 // pred_region
        // Predicated region
        $region37: #{one_conv_layer_net.1} parent=35 // pred_check
          %p237 = pneg %p38
        $region38: #{one_conv_layer_net.1} parent=35 // pred_check_branch
          %239 = sbr.rel (%p237) target = $region40
        $region39: #{one_conv_layer_net.1} parent=35 // pred_region
          %p240 = scmp.lt.s32.totalorder %s18, 1
          %s241 = scalar_select %p240, %s18, 1
          %s242 = smul.addr %s241, 6
          %s243 = smul.addr %s242, 4
          %s244 = scalar_lea.vmem %s0, %s243
        $region40: #{one_conv_layer_net.1} parent=35 // pred_fallthru
          _
      $region36: #{one_conv_layer_net.1} parent=5 // pred_fallthru
        _
      %p245 = scmp.le.s32.totalorder 1, %s18
      %p246 = scmp.lt.s32.totalorder %s18, 3
      %p247 = pnand %p245, %p246
      %p248 = pneg %p247
      // Predicated region
      $region41: #{one_conv_layer_net.1} parent=5 // pred_check
        _
      $region42: #{one_conv_layer_net.1} parent=5 // pred_check_branch
        %250 = sbr.rel (%p247) target = $region44
      $region43: #{one_conv_layer_net.1} parent=5 // pred_region
        %s251 = ssub.s32 %s18, 1
        // Predicated region
        $region45: #{one_conv_layer_net.1} parent=43 // pred_check
          %p252 = pneg %p65
        $region46: #{one_conv_layer_net.1} parent=43 // pred_check_branch
          %254 = sbr.rel (%p252) target = $region48
        $region47: #{one_conv_layer_net.1} parent=43 // pred_region
          %256 = dma.done [#allocation5], 16
        $region48: #{one_conv_layer_net.1} parent=43 // pred_fallthru
          _
        // Predicated region
        $region49: #{one_conv_layer_net.1} parent=43 // pred_check
          %p257 = pneg %p86
        $region50: #{one_conv_layer_net.1} parent=43 // pred_check_branch
          %259 = sbr.rel (%p257) target = $region52
        $region51: #{one_conv_layer_net.1} parent=43 // pred_region
          %261 = dma.done [#allocation7], 16
        $region52: #{one_conv_layer_net.1} parent=43 // pred_fallthru
          _
        // Predicated region
        $region53: #{one_conv_layer_net.1} parent=43 // pred_check
          %p262 = pneg %p107
        $region54: #{one_conv_layer_net.1} parent=43 // pred_check_branch
          %264 = sbr.rel (%p262) target = $region56
        $region55: #{one_conv_layer_net.1} parent=43 // pred_region
          %266 = dma.done [#allocation7], 16
        $region56: #{one_conv_layer_net.1} parent=43 // pred_fallthru
          _
        // Predicated region
        $region57: #{one_conv_layer_net.1} parent=43 // pred_check
          %p267 = pneg %p149
        $region58: #{one_conv_layer_net.1} parent=43 // pred_check_branch
          %269 = sbr.rel (%p267) target = $region60
        $region59: #{one_conv_layer_net.1} parent=43 // pred_region
          %271 = dma.done [#allocation10], 16
        $region60: #{one_conv_layer_net.1} parent=43 // pred_fallthru
          _
        %272 = sfence
        %p273 = scmp.lt.s32.totalorder %s23, 1
        %s274 = scalar_select %p273, %s23, 1
        %s275 = smul.addr %s274, 6
        %s276 = smul.addr %s275, 4
        %s277 = scalar_lea.vmem %s0, %s276
        %p278 = pneg %p44
        %p279 = pneg %p41
        %p280 = pneg %p65
        %p281 = pneg %p62
        %p282 = pneg %p86
        %p283 = pneg %p83
        %p284 = pneg %p107
        %p285 = pneg %p104
        %p286 = pneg %p128
        %p287 = pneg %p125
        %p288 = pneg %p149
        %p289 = pneg %p146
        %p290 = pneg %p175
        %p291 = pneg %p172
        %s292 = sand.u32 %s162, 1
        %s293 = scalar_lea.sflag [#allocation4], %s292
        %s294 = sand.u32 %s162, 1
        %s295 = scalar_lea.vmem [#allocation11], %s294
        %p296 = scmp.lt.s32.totalorder %s23, 1
        %s297 = scalar_select %p296, %s23, 1
        %s298 = smul.addr %s297, 6
        %s299 = smul.addr %s298, 4
        %s300 = scalar_lea.vmem %s0, %s299
        %vm301 = vcmask 146432
        %302 = vst.msk [vmem:[#allocation2] sm:$0xff] %vm301, 0.0
        %303 = vst.msk [vmem:[#allocation2 + $0x8] sm:$0xff] %vm301, 0.0
        %vm304 = vcmask 140288
        %305 = vst.msk [vmem:[#allocation2 + $0x10] sm:$0x3] %vm304, 0.0
        %306 = vst.msk [vmem:[#allocation2 + $0x18] sm:$0xff] %vm301, 0.0
        %307 = vst.msk [vmem:[#allocation2 + $0x20] sm:$0xff] %vm301, 0.0
        %308 = vst.msk [vmem:[#allocation2 + $0x28] sm:$0x3] %vm304, 0.0
        %309 = vst.msk [vmem:[#allocation2 + $0x30] sm:$0xff] %vm301, 0.0
        %310 = vst.msk [vmem:[#allocation2 + $0x38] sm:$0xff] %vm301, 0.0
        %311 = vst.msk [vmem:[#allocation2 + $0x40] sm:$0x3] %vm304, 0.0
        %v312 = vld [vmem:[%s300] sm:$0xf]
        %v313 = vld [vmem:[%s300 + $0x4] sm:$0xf]
        %v314 = vld [vmem:[%s300 + $0x8] sm:$0xf]
        %v315 = vld [vmem:[%s300 + $0xc] sm:$0xf]
        %v316 = vld [vmem:[%s300 + $0x10] sm:$0xf]
        %v317 = vld [vmem:[%s300 + $0x14] sm:$0xf]
        %v318 = vunpack.c.l.bf16 %v312
        %v319 = vunpack.c.l.bf16 %v313
        %v320 = vunpack.c.l.bf16 %v314
        %v321 = vunpack.c.l.bf16 %v315
        %v322 = vunpack.c.l.bf16 %v316
        %v323 = vunpack.c.l.bf16 %v317
        %330 = vrot.lane.b32.xlu0 %v318, 1
        %v331 = vpop.permute.xlu0 %330
        %332 = vrot.lane.b32.xlu0 %v319, 1
        %v333 = vpop.permute.xlu0 %332
        %334 = vrot.lane.b32.xlu0 %v320, 1
        %v335 = vpop.permute.xlu0 %334
        %336 = vrot.lane.b32.xlu0 %v321, 1
        %v337 = vpop.permute.xlu0 %336
        %338 = vrot.lane.b32.xlu0 %v322, 1
        %v339 = vpop.permute.xlu0 %338
        %340 = vrot.lane.b32.xlu0 %v323, 1
        %v341 = vpop.permute.xlu0 %340
        %vm348 = vcmask 138248
        %349 = vst.msk [vmem:[#allocation2 + $0x1] sm:$0xff] %vm348, %v331
        %350 = vst.msk [vmem:[#allocation2 + $0x9] sm:$0xff] %vm348, %v333
        %351 = vst.msk [vmem:[#allocation2 + $0x19] sm:$0xff] %vm348, %v335
        %352 = vst.msk [vmem:[#allocation2 + $0x21] sm:$0xff] %vm348, %v337
        %353 = vst.msk [vmem:[#allocation2 + $0x31] sm:$0xff] %vm348, %v339
        %354 = vst.msk [vmem:[#allocation2 + $0x39] sm:$0xff] %vm348, %v341
        %v355 = vld [vmem:[#allocation2] sm:$0xff]
        %v356 = vld [vmem:[#allocation2 + $0x8] sm:$0xff]
        %s357 = sld [smem:[#allocation3]]
        %v358 = vstv %s357
        %v359 = vmul.f32 %v358, %v355
        %v360 = vmul.f32 %v358, %v356
        %v361 = vadd.f32 %v359, 0.0
        %v362 = vadd.f32 %v360, 0.0
        %s363 = sld [smem:[#allocation3 + $0x1b]]
        %v364 = vstv %s363
        %v365 = vmul.f32 %v364, %v355
        %v366 = vmul.f32 %v364, %v356
        %v367 = vadd.f32 %v365, 0.0
        %v368 = vadd.f32 %v366, 0.0
        %s369 = sld [smem:[#allocation3 + $0x36]]
        %v370 = vstv %s369
        %v371 = vmul.f32 %v370, %v355
        %v372 = vmul.f32 %v370, %v356
        %v373 = vadd.f32 %v371, 0.0
        %v374 = vadd.f32 %v372, 0.0
        %s375 = sld [smem:[#allocation3 + $0x51]]
        %v376 = vstv %s375
        %v377 = vmul.f32 %v376, %v355
        %v378 = vmul.f32 %v376, %v356
        %v379 = vadd.f32 %v377, 0.0
        %v380 = vadd.f32 %v378, 0.0
        %s381 = sld [smem:[#allocation3 + $0x1]]
        %v382 = vstv %s381
        %v383 = vmul.f32 %v382, %v355
        %v384 = vmul.f32 %v382, %v356
        %387 = vrot.lane.b32.xlu0 %v383, 127
        %v388 = vpop.permute.xlu0 %387
        %389 = vrot.lane.b32.xlu0 %v384, 127
        %v390 = vpop.permute.xlu0 %389
        %v393 = vadd.f32 %v361, %v388
        %v394 = vadd.f32 %v362, %v390
        %s395 = sld [smem:[#allocation3 + $0x1c]]
        %v396 = vstv %s395
        %v397 = vmul.f32 %v396, %v355
        %v398 = vmul.f32 %v396, %v356
        %401 = vrot.lane.b32.xlu0 %v397, 127
        %v402 = vpop.permute.xlu0 %401
        %403 = vrot.lane.b32.xlu0 %v398, 127
        %v404 = vpop.permute.xlu0 %403
        %v407 = vadd.f32 %v367, %v402
        %v408 = vadd.f32 %v368, %v404
        %s409 = sld [smem:[#allocation3 + $0x37]]
        %v410 = vstv %s409
        %v411 = vmul.f32 %v410, %v355
        %v412 = vmul.f32 %v410, %v356
        %415 = vrot.lane.b32.xlu0 %v411, 127
        %v416 = vpop.permute.xlu0 %415
        %417 = vrot.lane.b32.xlu0 %v412, 127
        %v418 = vpop.permute.xlu0 %417
        %v421 = vadd.f32 %v373, %v416
        %v422 = vadd.f32 %v374, %v418
        %s423 = sld [smem:[#allocation3 + $0x52]]
        %v424 = vstv %s423
        %v425 = vmul.f32 %v424, %v355
        %v426 = vmul.f32 %v424, %v356
        %429 = vrot.lane.b32.xlu0 %v425, 127
        %v430 = vpop.permute.xlu0 %429
        %431 = vrot.lane.b32.xlu0 %v426, 127
        %v432 = vpop.permute.xlu0 %431
        %v435 = vadd.f32 %v379, %v430
        %v436 = vadd.f32 %v380, %v432
        %s437 = sld [smem:[#allocation3 + $0x2]]
        %v438 = vstv %s437
        %v439 = vmul.f32 %v438, %v355
        %v440 = vmul.f32 %v438, %v356
        %443 = vrot.lane.b32.xlu0 %v439, 126
        %v444 = vpop.permute.xlu0 %443
        %445 = vrot.lane.b32.xlu0 %v440, 126
        %v446 = vpop.permute.xlu0 %445
        %v449 = vadd.f32 %v393, %v444
        %v450 = vadd.f32 %v394, %v446
        %s451 = sld [smem:[#allocation3 + $0x1d]]
        %v452 = vstv %s451
        %v453 = vmul.f32 %v452, %v355
        %v454 = vmul.f32 %v452, %v356
        %457 = vrot.lane.b32.xlu0 %v453, 126
        %v458 = vpop.permute.xlu0 %457
        %459 = vrot.lane.b32.xlu0 %v454, 126
        %v460 = vpop.permute.xlu0 %459
        %v463 = vadd.f32 %v407, %v458
        %v464 = vadd.f32 %v408, %v460
        %s465 = sld [smem:[#allocation3 + $0x38]]
        %v466 = vstv %s465
        %v467 = vmul.f32 %v466, %v355
        %v468 = vmul.f32 %v466, %v356
        %471 = vrot.lane.b32.xlu0 %v467, 126
        %v472 = vpop.permute.xlu0 %471
        %473 = vrot.lane.b32.xlu0 %v468, 126
        %v474 = vpop.permute.xlu0 %473
        %v477 = vadd.f32 %v421, %v472
        %v478 = vadd.f32 %v422, %v474
        %s479 = sld [smem:[#allocation3 + $0x53]]
        %v480 = vstv %s479
        %v481 = vmul.f32 %v480, %v355
        %v482 = vmul.f32 %v480, %v356
        %485 = vrot.lane.b32.xlu0 %v481, 126
        %v486 = vpop.permute.xlu0 %485
        %487 = vrot.lane.b32.xlu0 %v482, 126
        %v488 = vpop.permute.xlu0 %487
        %v491 = vadd.f32 %v435, %v486
        %v492 = vadd.f32 %v436, %v488
        %v493 = vld [vmem:[#allocation2 + $0x1] sm:$0xff]
        %v494 = vld [vmem:[#allocation2 + $0x9] sm:$0xff]
        %s495 = sld [smem:[#allocation3 + $0x3]]
        %v496 = vstv %s495
        %v497 = vmul.f32 %v496, %v493
        %v498 = vmul.f32 %v496, %v494
        %v499 = vadd.f32 %v449, %v497
        %v500 = vadd.f32 %v450, %v498
        %s501 = sld [smem:[#allocation3 + $0x1e]]
        %v502 = vstv %s501
        %v503 = vmul.f32 %v502, %v493
        %v504 = vmul.f32 %v502, %v494
        %v505 = vadd.f32 %v463, %v503
        %v506 = vadd.f32 %v464, %v504
        %s507 = sld [smem:[#allocation3 + $0x39]]
        %v508 = vstv %s507
        %v509 = vmul.f32 %v508, %v493
        %v510 = vmul.f32 %v508, %v494
        %v511 = vadd.f32 %v477, %v509
        %v512 = vadd.f32 %v478, %v510
        %s513 = sld [smem:[#allocation3 + $0x54]]
        %v514 = vstv %s513
        %v515 = vmul.f32 %v514, %v493
        %v516 = vmul.f32 %v514, %v494
        %v517 = vadd.f32 %v491, %v515
        %v518 = vadd.f32 %v492, %v516
        %s519 = sld [smem:[#allocation3 + $0x4]]
        %v520 = vstv %s519
        %v521 = vmul.f32 %v520, %v493
        %v522 = vmul.f32 %v520, %v494
        %525 = vrot.lane.b32.xlu0 %v521, 127
        %v526 = vpop.permute.xlu0 %525
        %527 = vrot.lane.b32.xlu0 %v522, 127
        %v528 = vpop.permute.xlu0 %527
        %v531 = vadd.f32 %v499, %v526
        %v532 = vadd.f32 %v500, %v528
        %s533 = sld [smem:[#allocation3 + $0x1f]]
        %v534 = vstv %s533
        %v535 = vmul.f32 %v534, %v493
        %v536 = vmul.f32 %v534, %v494
        %539 = vrot.lane.b32.xlu0 %v535, 127
        %v540 = vpop.permute.xlu0 %539
        %541 = vrot.lane.b32.xlu0 %v536, 127
        %v542 = vpop.permute.xlu0 %541
        %v545 = vadd.f32 %v505, %v540
        %v546 = vadd.f32 %v506, %v542
        %s547 = sld [smem:[#allocation3 + $0x3a]]
        %v548 = vstv %s547
        %v549 = vmul.f32 %v548, %v493
        %v550 = vmul.f32 %v548, %v494
        %553 = vrot.lane.b32.xlu0 %v549, 127
        %v554 = vpop.permute.xlu0 %553
        %555 = vrot.lane.b32.xlu0 %v550, 127
        %v556 = vpop.permute.xlu0 %555
        %v559 = vadd.f32 %v511, %v554
        %v560 = vadd.f32 %v512, %v556
        %s561 = sld [smem:[#allocation3 + $0x55]]
        %v562 = vstv %s561
        %v563 = vmul.f32 %v562, %v493
        %v564 = vmul.f32 %v562, %v494
        %567 = vrot.lane.b32.xlu0 %v563, 127
        %v568 = vpop.permute.xlu0 %567
        %569 = vrot.lane.b32.xlu0 %v564, 127
        %v570 = vpop.permute.xlu0 %569
        %v573 = vadd.f32 %v517, %v568
        %v574 = vadd.f32 %v518, %v570
        %s575 = sld [smem:[#allocation3 + $0x5]]
        %v576 = vstv %s575
        %v577 = vmul.f32 %v576, %v493
        %v578 = vmul.f32 %v576, %v494
        %581 = vrot.lane.b32.xlu0 %v577, 126
        %v582 = vpop.permute.xlu0 %581
        %583 = vrot.lane.b32.xlu0 %v578, 126
        %v584 = vpop.permute.xlu0 %583
        %v587 = vadd.f32 %v531, %v582
        %v588 = vadd.f32 %v532, %v584
        %s589 = sld [smem:[#allocation3 + $0x20]]
        %v590 = vstv %s589
        %v591 = vmul.f32 %v590, %v493
        %v592 = vmul.f32 %v590, %v494
        %595 = vrot.lane.b32.xlu0 %v591, 126
        %v596 = vpop.permute.xlu0 %595
        %597 = vrot.lane.b32.xlu0 %v592, 126
        %v598 = vpop.permute.xlu0 %597
        %v601 = vadd.f32 %v545, %v596
        %v602 = vadd.f32 %v546, %v598
        %s603 = sld [smem:[#allocation3 + $0x3b]]
        %v604 = vstv %s603
        %v605 = vmul.f32 %v604, %v493
        %v606 = vmul.f32 %v604, %v494
        %609 = vrot.lane.b32.xlu0 %v605, 126
        %v610 = vpop.permute.xlu0 %609
        %611 = vrot.lane.b32.xlu0 %v606, 126
        %v612 = vpop.permute.xlu0 %611
        %v615 = vadd.f32 %v559, %v610
        %v616 = vadd.f32 %v560, %v612
        %s617 = sld [smem:[#allocation3 + $0x56]]
        %v618 = vstv %s617
        %v619 = vmul.f32 %v618, %v493
        %v620 = vmul.f32 %v618, %v494
        %623 = vrot.lane.b32.xlu0 %v619, 126
        %v624 = vpop.permute.xlu0 %623
        %625 = vrot.lane.b32.xlu0 %v620, 126
        %v626 = vpop.permute.xlu0 %625
        %v629 = vadd.f32 %v573, %v624
        %v630 = vadd.f32 %v574, %v626
        %v631 = vld [vmem:[#allocation2 + $0x2] sm:$0xff]
        %v632 = vld [vmem:[#allocation2 + $0xa] sm:$0xff]
        %s633 = sld [smem:[#allocation3 + $0x6]]
        %v634 = vstv %s633
        %v635 = vmul.f32 %v634, %v631
        %v636 = vmul.f32 %v634, %v632
        %v637 = vadd.f32 %v587, %v635
        %v638 = vadd.f32 %v588, %v636
        %s639 = sld [smem:[#allocation3 + $0x21]]
        %v640 = vstv %s639
        %v641 = vmul.f32 %v640, %v631
        %v642 = vmul.f32 %v640, %v632
        %v643 = vadd.f32 %v601, %v641
        %v644 = vadd.f32 %v602, %v642
        %s645 = sld [smem:[#allocation3 + $0x3c]]
        %v646 = vstv %s645
        %v647 = vmul.f32 %v646, %v631
        %v648 = vmul.f32 %v646, %v632
        %v649 = vadd.f32 %v615, %v647
        %v650 = vadd.f32 %v616, %v648
        %s651 = sld [smem:[#allocation3 + $0x57]]
        %v652 = vstv %s651
        %v653 = vmul.f32 %v652, %v631
        %v654 = vmul.f32 %v652, %v632
        %v655 = vadd.f32 %v629, %v653
        %v656 = vadd.f32 %v630, %v654
        %s657 = sld [smem:[#allocation3 + $0x7]]
        %v658 = vstv %s657
        %v659 = vmul.f32 %v658, %v631
        %v660 = vmul.f32 %v658, %v632
        %663 = vrot.lane.b32.xlu0 %v659, 127
        %v664 = vpop.permute.xlu0 %663
        %665 = vrot.lane.b32.xlu0 %v660, 127
        %v666 = vpop.permute.xlu0 %665
        %v669 = vadd.f32 %v637, %v664
        %v670 = vadd.f32 %v638, %v666
        %s671 = sld [smem:[#allocation3 + $0x22]]
        %v672 = vstv %s671
        %v673 = vmul.f32 %v672, %v631
        %v674 = vmul.f32 %v672, %v632
        %677 = vrot.lane.b32.xlu0 %v673, 127
        %v678 = vpop.permute.xlu0 %677
        %679 = vrot.lane.b32.xlu0 %v674, 127
        %v680 = vpop.permute.xlu0 %679
        %v683 = vadd.f32 %v643, %v678
        %v684 = vadd.f32 %v644, %v680
        %s685 = sld [smem:[#allocation3 + $0x3d]]
        %v686 = vstv %s685
        %v687 = vmul.f32 %v686, %v631
        %v688 = vmul.f32 %v686, %v632
        %691 = vrot.lane.b32.xlu0 %v687, 127
        %v692 = vpop.permute.xlu0 %691
        %693 = vrot.lane.b32.xlu0 %v688, 127
        %v694 = vpop.permute.xlu0 %693
        %v697 = vadd.f32 %v649, %v692
        %v698 = vadd.f32 %v650, %v694
        %s699 = sld [smem:[#allocation3 + $0x58]]
        %v700 = vstv %s699
        %v701 = vmul.f32 %v700, %v631
        %v702 = vmul.f32 %v700, %v632
        %705 = vrot.lane.b32.xlu0 %v701, 127
        %v706 = vpop.permute.xlu0 %705
        %707 = vrot.lane.b32.xlu0 %v702, 127
        %v708 = vpop.permute.xlu0 %707
        %v711 = vadd.f32 %v655, %v706
        %v712 = vadd.f32 %v656, %v708
        %s713 = sld [smem:[#allocation3 + $0x8]]
        %v714 = vstv %s713
        %v715 = vmul.f32 %v714, %v631
        %v716 = vmul.f32 %v714, %v632
        %719 = vrot.lane.b32.xlu0 %v715, 126
        %v720 = vpop.permute.xlu0 %719
        %721 = vrot.lane.b32.xlu0 %v716, 126
        %v722 = vpop.permute.xlu0 %721
        %v725 = vadd.f32 %v669, %v720
        %v726 = vadd.f32 %v670, %v722
        %s727 = sld [smem:[#allocation3 + $0x23]]
        %v728 = vstv %s727
        %v729 = vmul.f32 %v728, %v631
        %v730 = vmul.f32 %v728, %v632
        %733 = vrot.lane.b32.xlu0 %v729, 126
        %v734 = vpop.permute.xlu0 %733
        %735 = vrot.lane.b32.xlu0 %v730, 126
        %v736 = vpop.permute.xlu0 %735
        %v739 = vadd.f32 %v683, %v734
        %v740 = vadd.f32 %v684, %v736
        %s741 = sld [smem:[#allocation3 + $0x3e]]
        %v742 = vstv %s741
        %v743 = vmul.f32 %v742, %v631
        %v744 = vmul.f32 %v742, %v632
        %747 = vrot.lane.b32.xlu0 %v743, 126
        %v748 = vpop.permute.xlu0 %747
        %749 = vrot.lane.b32.xlu0 %v744, 126
        %v750 = vpop.permute.xlu0 %749
        %v753 = vadd.f32 %v697, %v748
        %v754 = vadd.f32 %v698, %v750
        %s755 = sld [smem:[#allocation3 + $0x59]]
        %v756 = vstv %s755
        %v757 = vmul.f32 %v756, %v631
        %v758 = vmul.f32 %v756, %v632
        %761 = vrot.lane.b32.xlu0 %v757, 126
        %v762 = vpop.permute.xlu0 %761
        %763 = vrot.lane.b32.xlu0 %v758, 126
        %v764 = vpop.permute.xlu0 %763
        %v767 = vadd.f32 %v711, %v762
        %v768 = vadd.f32 %v712, %v764
        %s769 = scalar_lea.vmem [#allocation2], 24
        %v770 = vld [vmem:[%s769] sm:$0xff]
        %v771 = vld [vmem:[%s769 + $0x8] sm:$0xff]
        %s772 = sld [smem:[#allocation3 + $0x9]]
        %v773 = vstv %s772
        %v774 = vmul.f32 %v773, %v770
        %v775 = vmul.f32 %v773, %v771
        %v776 = vadd.f32 %v725, %v774
        %v777 = vadd.f32 %v726, %v775
        %s778 = sld [smem:[#allocation3 + $0x24]]
        %v779 = vstv %s778
        %v780 = vmul.f32 %v779, %v770
        %v781 = vmul.f32 %v779, %v771
        %v782 = vadd.f32 %v739, %v780
        %v783 = vadd.f32 %v740, %v781
        %s784 = sld [smem:[#allocation3 + $0x3f]]
        %v785 = vstv %s784
        %v786 = vmul.f32 %v785, %v770
        %v787 = vmul.f32 %v785, %v771
        %v788 = vadd.f32 %v753, %v786
        %v789 = vadd.f32 %v754, %v787
        %s790 = sld [smem:[#allocation3 + $0x5a]]
        %v791 = vstv %s790
        %v792 = vmul.f32 %v791, %v770
        %v793 = vmul.f32 %v791, %v771
        %v794 = vadd.f32 %v767, %v792
        %v795 = vadd.f32 %v768, %v793
        %s796 = sld [smem:[#allocation3 + $0xa]]
        %v797 = vstv %s796
        %v798 = vmul.f32 %v797, %v770
        %v799 = vmul.f32 %v797, %v771
        %802 = vrot.lane.b32.xlu0 %v798, 127
        %v803 = vpop.permute.xlu0 %802
        %804 = vrot.lane.b32.xlu0 %v799, 127
        %v805 = vpop.permute.xlu0 %804
        %v808 = vadd.f32 %v776, %v803
        %v809 = vadd.f32 %v777, %v805
        %s810 = sld [smem:[#allocation3 + $0x25]]
        %v811 = vstv %s810
        %v812 = vmul.f32 %v811, %v770
        %v813 = vmul.f32 %v811, %v771
        %816 = vrot.lane.b32.xlu0 %v812, 127
        %v817 = vpop.permute.xlu0 %816
        %818 = vrot.lane.b32.xlu0 %v813, 127
        %v819 = vpop.permute.xlu0 %818
        %v822 = vadd.f32 %v782, %v817
        %v823 = vadd.f32 %v783, %v819
        %s824 = sld [smem:[#allocation3 + $0x40]]
        %v825 = vstv %s824
        %v826 = vmul.f32 %v825, %v770
        %v827 = vmul.f32 %v825, %v771
        %830 = vrot.lane.b32.xlu0 %v826, 127
        %v831 = vpop.permute.xlu0 %830
        %832 = vrot.lane.b32.xlu0 %v827, 127
        %v833 = vpop.permute.xlu0 %832
        %v836 = vadd.f32 %v788, %v831
        %v837 = vadd.f32 %v789, %v833
        %s838 = sld [smem:[#allocation3 + $0x5b]]
        %v839 = vstv %s838
        %v840 = vmul.f32 %v839, %v770
        %v841 = vmul.f32 %v839, %v771
        %844 = vrot.lane.b32.xlu0 %v840, 127
        %v845 = vpop.permute.xlu0 %844
        %846 = vrot.lane.b32.xlu0 %v841, 127
        %v847 = vpop.permute.xlu0 %846
        %v850 = vadd.f32 %v794, %v845
        %v851 = vadd.f32 %v795, %v847
        %s852 = sld [smem:[#allocation3 + $0xb]]
        %v853 = vstv %s852
        %v854 = vmul.f32 %v853, %v770
        %v855 = vmul.f32 %v853, %v771
        %858 = vrot.lane.b32.xlu0 %v854, 126
        %v859 = vpop.permute.xlu0 %858
        %860 = vrot.lane.b32.xlu0 %v855, 126
        %v861 = vpop.permute.xlu0 %860
        %v864 = vadd.f32 %v808, %v859
        %v865 = vadd.f32 %v809, %v861
        %s866 = sld [smem:[#allocation3 + $0x26]]
        %v867 = vstv %s866
        %v868 = vmul.f32 %v867, %v770
        %v869 = vmul.f32 %v867, %v771
        %872 = vrot.lane.b32.xlu0 %v868, 126
        %v873 = vpop.permute.xlu0 %872
        %874 = vrot.lane.b32.xlu0 %v869, 126
        %v875 = vpop.permute.xlu0 %874
        %v878 = vadd.f32 %v822, %v873
        %v879 = vadd.f32 %v823, %v875
        %s880 = sld [smem:[#allocation3 + $0x41]]
        %v881 = vstv %s880
        %v882 = vmul.f32 %v881, %v770
        %v883 = vmul.f32 %v881, %v771
        %886 = vrot.lane.b32.xlu0 %v882, 126
        %v887 = vpop.permute.xlu0 %886
        %888 = vrot.lane.b32.xlu0 %v883, 126
        %v889 = vpop.permute.xlu0 %888
        %v892 = vadd.f32 %v836, %v887
        %v893 = vadd.f32 %v837, %v889
        %s894 = sld [smem:[#allocation3 + $0x5c]]
        %v895 = vstv %s894
        %v896 = vmul.f32 %v895, %v770
        %v897 = vmul.f32 %v895, %v771
        %900 = vrot.lane.b32.xlu0 %v896, 126
        %v901 = vpop.permute.xlu0 %900
        %902 = vrot.lane.b32.xlu0 %v897, 126
        %v903 = vpop.permute.xlu0 %902
        %v906 = vadd.f32 %v850, %v901
        %v907 = vadd.f32 %v851, %v903
        %v908 = vld [vmem:[%s769 + $0x1] sm:$0xff]
        %v909 = vld [vmem:[%s769 + $0x9] sm:$0xff]
        %s910 = sld [smem:[#allocation3 + $0xc]]
        %v911 = vstv %s910
        %v912 = vmul.f32 %v911, %v908
        %v913 = vmul.f32 %v911, %v909
        %v914 = vadd.f32 %v864, %v912
        %v915 = vadd.f32 %v865, %v913
        %s916 = sld [smem:[#allocation3 + $0x27]]
        %v917 = vstv %s916
        %v918 = vmul.f32 %v917, %v908
        %v919 = vmul.f32 %v917, %v909
        %v920 = vadd.f32 %v878, %v918
        %v921 = vadd.f32 %v879, %v919
        %s922 = sld [smem:[#allocation3 + $0x42]]
        %v923 = vstv %s922
        %v924 = vmul.f32 %v923, %v908
        %v925 = vmul.f32 %v923, %v909
        %v926 = vadd.f32 %v892, %v924
        %v927 = vadd.f32 %v893, %v925
        %s928 = sld [smem:[#allocation3 + $0x5d]]
        %v929 = vstv %s928
        %v930 = vmul.f32 %v929, %v908
        %v931 = vmul.f32 %v929, %v909
        %v932 = vadd.f32 %v906, %v930
        %v933 = vadd.f32 %v907, %v931
        %s934 = sld [smem:[#allocation3 + $0xd]]
        %v935 = vstv %s934
        %v936 = vmul.f32 %v935, %v908
        %v937 = vmul.f32 %v935, %v909
        %940 = vrot.lane.b32.xlu0 %v936, 127
        %v941 = vpop.permute.xlu0 %940
        %942 = vrot.lane.b32.xlu0 %v937, 127
        %v943 = vpop.permute.xlu0 %942
        %v946 = vadd.f32 %v914, %v941
        %v947 = vadd.f32 %v915, %v943
        %s948 = sld [smem:[#allocation3 + $0x28]]
        %v949 = vstv %s948
        %v950 = vmul.f32 %v949, %v908
        %v951 = vmul.f32 %v949, %v909
        %954 = vrot.lane.b32.xlu0 %v950, 127
        %v955 = vpop.permute.xlu0 %954
        %956 = vrot.lane.b32.xlu0 %v951, 127
        %v957 = vpop.permute.xlu0 %956
        %v960 = vadd.f32 %v920, %v955
        %v961 = vadd.f32 %v921, %v957
        %s962 = sld [smem:[#allocation3 + $0x43]]
        %v963 = vstv %s962
        %v964 = vmul.f32 %v963, %v908
        %v965 = vmul.f32 %v963, %v909
        %968 = vrot.lane.b32.xlu0 %v964, 127
        %v969 = vpop.permute.xlu0 %968
        %970 = vrot.lane.b32.xlu0 %v965, 127
        %v971 = vpop.permute.xlu0 %970
        %v974 = vadd.f32 %v926, %v969
        %v975 = vadd.f32 %v927, %v971
        %s976 = sld [smem:[#allocation3 + $0x5e]]
        %v977 = vstv %s976
        %v978 = vmul.f32 %v977, %v908
        %v979 = vmul.f32 %v977, %v909
        %982 = vrot.lane.b32.xlu0 %v978, 127
        %v983 = vpop.permute.xlu0 %982
        %984 = vrot.lane.b32.xlu0 %v979, 127
        %v985 = vpop.permute.xlu0 %984
        %v988 = vadd.f32 %v932, %v983
        %v989 = vadd.f32 %v933, %v985
        %s990 = sld [smem:[#allocation3 + $0xe]]
        %v991 = vstv %s990
        %v992 = vmul.f32 %v991, %v908
        %v993 = vmul.f32 %v991, %v909
        %996 = vrot.lane.b32.xlu0 %v992, 126
        %v997 = vpop.permute.xlu0 %996
        %998 = vrot.lane.b32.xlu0 %v993, 126
        %v999 = vpop.permute.xlu0 %998
        %v1002 = vadd.f32 %v946, %v997
        %v1003 = vadd.f32 %v947, %v999
        %s1004 = sld [smem:[#allocation3 + $0x29]]
        %v1005 = vstv %s1004
        %v1006 = vmul.f32 %v1005, %v908
        %v1007 = vmul.f32 %v1005, %v909
        %1010 = vrot.lane.b32.xlu0 %v1006, 126
        %v1011 = vpop.permute.xlu0 %1010
        %1012 = vrot.lane.b32.xlu0 %v1007, 126
        %v1013 = vpop.permute.xlu0 %1012
        %v1016 = vadd.f32 %v960, %v1011
        %v1017 = vadd.f32 %v961, %v1013
        %s1018 = sld [smem:[#allocation3 + $0x44]]
        %v1019 = vstv %s1018
        %v1020 = vmul.f32 %v1019, %v908
        %v1021 = vmul.f32 %v1019, %v909
        %1024 = vrot.lane.b32.xlu0 %v1020, 126
        %v1025 = vpop.permute.xlu0 %1024
        %1026 = vrot.lane.b32.xlu0 %v1021, 126
        %v1027 = vpop.permute.xlu0 %1026
        %v1030 = vadd.f32 %v974, %v1025
        %v1031 = vadd.f32 %v975, %v1027
        %s1032 = sld [smem:[#allocation3 + $0x5f]]
        %v1033 = vstv %s1032
        %v1034 = vmul.f32 %v1033, %v908
        %v1035 = vmul.f32 %v1033, %v909
        %1038 = vrot.lane.b32.xlu0 %v1034, 126
        %v1039 = vpop.permute.xlu0 %1038
        %1040 = vrot.lane.b32.xlu0 %v1035, 126
        %v1041 = vpop.permute.xlu0 %1040
        %v1044 = vadd.f32 %v988, %v1039
        %v1045 = vadd.f32 %v989, %v1041
        %v1046 = vld [vmem:[%s769 + $0x2] sm:$0xff]
        %v1047 = vld [vmem:[%s769 + $0xa] sm:$0xff]
        %s1048 = sld [smem:[#allocation3 + $0xf]]
        %v1049 = vstv %s1048
        %v1050 = vmul.f32 %v1049, %v1046
        %v1051 = vmul.f32 %v1049, %v1047
        %v1052 = vadd.f32 %v1002, %v1050
        %v1053 = vadd.f32 %v1003, %v1051
        %s1054 = sld [smem:[#allocation3 + $0x2a]]
        %v1055 = vstv %s1054
        %v1056 = vmul.f32 %v1055, %v1046
        %v1057 = vmul.f32 %v1055, %v1047
        %v1058 = vadd.f32 %v1016, %v1056
        %v1059 = vadd.f32 %v1017, %v1057
        %s1060 = sld [smem:[#allocation3 + $0x45]]
        %v1061 = vstv %s1060
        %v1062 = vmul.f32 %v1061, %v1046
        %v1063 = vmul.f32 %v1061, %v1047
        %v1064 = vadd.f32 %v1030, %v1062
        %v1065 = vadd.f32 %v1031, %v1063
        %s1066 = sld [smem:[#allocation3 + $0x60]]
        %v1067 = vstv %s1066
        %v1068 = vmul.f32 %v1067, %v1046
        %v1069 = vmul.f32 %v1067, %v1047
        %v1070 = vadd.f32 %v1044, %v1068
        %v1071 = vadd.f32 %v1045, %v1069
        %s1072 = sld [smem:[#allocation3 + $0x10]]
        %v1073 = vstv %s1072
        %v1074 = vmul.f32 %v1073, %v1046
        %v1075 = vmul.f32 %v1073, %v1047
        %1078 = vrot.lane.b32.xlu0 %v1074, 127
        %v1079 = vpop.permute.xlu0 %1078
        %1080 = vrot.lane.b32.xlu0 %v1075, 127
        %v1081 = vpop.permute.xlu0 %1080
        %v1084 = vadd.f32 %v1052, %v1079
        %v1085 = vadd.f32 %v1053, %v1081
        %s1086 = sld [smem:[#allocation3 + $0x2b]]
        %v1087 = vstv %s1086
        %v1088 = vmul.f32 %v1087, %v1046
        %v1089 = vmul.f32 %v1087, %v1047
        %1092 = vrot.lane.b32.xlu0 %v1088, 127
        %v1093 = vpop.permute.xlu0 %1092
        %1094 = vrot.lane.b32.xlu0 %v1089, 127
        %v1095 = vpop.permute.xlu0 %1094
        %v1098 = vadd.f32 %v1058, %v1093
        %v1099 = vadd.f32 %v1059, %v1095
        %s1100 = sld [smem:[#allocation3 + $0x46]]
        %v1101 = vstv %s1100
        %v1102 = vmul.f32 %v1101, %v1046
        %v1103 = vmul.f32 %v1101, %v1047
        %1106 = vrot.lane.b32.xlu0 %v1102, 127
        %v1107 = vpop.permute.xlu0 %1106
        %1108 = vrot.lane.b32.xlu0 %v1103, 127
        %v1109 = vpop.permute.xlu0 %1108
        %v1112 = vadd.f32 %v1064, %v1107
        %v1113 = vadd.f32 %v1065, %v1109
        %s1114 = sld [smem:[#allocation3 + $0x61]]
        %v1115 = vstv %s1114
        %v1116 = vmul.f32 %v1115, %v1046
        %v1117 = vmul.f32 %v1115, %v1047
        %1120 = vrot.lane.b32.xlu0 %v1116, 127
        %v1121 = vpop.permute.xlu0 %1120
        %1122 = vrot.lane.b32.xlu0 %v1117, 127
        %v1123 = vpop.permute.xlu0 %1122
        %v1126 = vadd.f32 %v1070, %v1121
        %v1127 = vadd.f32 %v1071, %v1123
        %s1128 = sld [smem:[#allocation3 + $0x11]]
        %v1129 = vstv %s1128
        %v1130 = vmul.f32 %v1129, %v1046
        %v1131 = vmul.f32 %v1129, %v1047
        %1134 = vrot.lane.b32.xlu0 %v1130, 126
        %v1135 = vpop.permute.xlu0 %1134
        %1136 = vrot.lane.b32.xlu0 %v1131, 126
        %v1137 = vpop.permute.xlu0 %1136
        %v1140 = vadd.f32 %v1084, %v1135
        %v1141 = vadd.f32 %v1085, %v1137
        %s1142 = sld [smem:[#allocation3 + $0x2c]]
        %v1143 = vstv %s1142
        %v1144 = vmul.f32 %v1143, %v1046
        %v1145 = vmul.f32 %v1143, %v1047
        %1148 = vrot.lane.b32.xlu0 %v1144, 126
        %v1149 = vpop.permute.xlu0 %1148
        %1150 = vrot.lane.b32.xlu0 %v1145, 126
        %v1151 = vpop.permute.xlu0 %1150
        %v1154 = vadd.f32 %v1098, %v1149
        %v1155 = vadd.f32 %v1099, %v1151
        %s1156 = sld [smem:[#allocation3 + $0x47]]
        %v1157 = vstv %s1156
        %v1158 = vmul.f32 %v1157, %v1046
        %v1159 = vmul.f32 %v1157, %v1047
        %1162 = vrot.lane.b32.xlu0 %v1158, 126
        %v1163 = vpop.permute.xlu0 %1162
        %1164 = vrot.lane.b32.xlu0 %v1159, 126
        %v1165 = vpop.permute.xlu0 %1164
        %v1168 = vadd.f32 %v1112, %v1163
        %v1169 = vadd.f32 %v1113, %v1165
        %s1170 = sld [smem:[#allocation3 + $0x62]]
        %v1171 = vstv %s1170
        %v1172 = vmul.f32 %v1171, %v1046
        %v1173 = vmul.f32 %v1171, %v1047
        %1176 = vrot.lane.b32.xlu0 %v1172, 126
        %v1177 = vpop.permute.xlu0 %1176
        %1178 = vrot.lane.b32.xlu0 %v1173, 126
        %v1179 = vpop.permute.xlu0 %1178
        %v1182 = vadd.f32 %v1126, %v1177
        %v1183 = vadd.f32 %v1127, %v1179
        %s1184 = scalar_lea.vmem [#allocation2], 48
        %v1185 = vld [vmem:[%s1184] sm:$0xff]
        %v1186 = vld [vmem:[%s1184 + $0x8] sm:$0xff]
        %s1187 = sld [smem:[#allocation3 + $0x12]]
        %v1188 = vstv %s1187
        %v1189 = vmul.f32 %v1188, %v1185
        %v1190 = vmul.f32 %v1188, %v1186
        %v1191 = vadd.f32 %v1140, %v1189
        %v1192 = vadd.f32 %v1141, %v1190
        %s1193 = sld [smem:[#allocation3 + $0x2d]]
        %v1194 = vstv %s1193
        %v1195 = vmul.f32 %v1194, %v1185
        %v1196 = vmul.f32 %v1194, %v1186
        %v1197 = vadd.f32 %v1154, %v1195
        %v1198 = vadd.f32 %v1155, %v1196
        %s1199 = sld [smem:[#allocation3 + $0x48]]
        %v1200 = vstv %s1199
        %v1201 = vmul.f32 %v1200, %v1185
        %v1202 = vmul.f32 %v1200, %v1186
        %v1203 = vadd.f32 %v1168, %v1201
        %v1204 = vadd.f32 %v1169, %v1202
        %s1205 = sld [smem:[#allocation3 + $0x63]]
        %v1206 = vstv %s1205
        %v1207 = vmul.f32 %v1206, %v1185
        %v1208 = vmul.f32 %v1206, %v1186
        %v1209 = vadd.f32 %v1182, %v1207
        %v1210 = vadd.f32 %v1183, %v1208
        %s1211 = sld [smem:[#allocation3 + $0x13]]
        %v1212 = vstv %s1211
        %v1213 = vmul.f32 %v1212, %v1185
        %v1214 = vmul.f32 %v1212, %v1186
        %1217 = vrot.lane.b32.xlu0 %v1213, 127
        %v1218 = vpop.permute.xlu0 %1217
        %1219 = vrot.lane.b32.xlu0 %v1214, 127
        %v1220 = vpop.permute.xlu0 %1219
        %v1223 = vadd.f32 %v1191, %v1218
        %v1224 = vadd.f32 %v1192, %v1220
        %s1225 = sld [smem:[#allocation3 + $0x2e]]
        %v1226 = vstv %s1225
        %v1227 = vmul.f32 %v1226, %v1185
        %v1228 = vmul.f32 %v1226, %v1186
        %1231 = vrot.lane.b32.xlu0 %v1227, 127
        %v1232 = vpop.permute.xlu0 %1231
        %1233 = vrot.lane.b32.xlu0 %v1228, 127
        %v1234 = vpop.permute.xlu0 %1233
        %v1237 = vadd.f32 %v1197, %v1232
        %v1238 = vadd.f32 %v1198, %v1234
        %s1239 = sld [smem:[#allocation3 + $0x49]]
        %v1240 = vstv %s1239
        %v1241 = vmul.f32 %v1240, %v1185
        %v1242 = vmul.f32 %v1240, %v1186
        %1245 = vrot.lane.b32.xlu0 %v1241, 127
        %v1246 = vpop.permute.xlu0 %1245
        %1247 = vrot.lane.b32.xlu0 %v1242, 127
        %v1248 = vpop.permute.xlu0 %1247
        %v1251 = vadd.f32 %v1203, %v1246
        %v1252 = vadd.f32 %v1204, %v1248
        %s1253 = sld [smem:[#allocation3 + $0x64]]
        %v1254 = vstv %s1253
        %v1255 = vmul.f32 %v1254, %v1185
        %v1256 = vmul.f32 %v1254, %v1186
        %1259 = vrot.lane.b32.xlu0 %v1255, 127
        %v1260 = vpop.permute.xlu0 %1259
        %1261 = vrot.lane.b32.xlu0 %v1256, 127
        %v1262 = vpop.permute.xlu0 %1261
        %v1265 = vadd.f32 %v1209, %v1260
        %v1266 = vadd.f32 %v1210, %v1262
        %s1267 = sld [smem:[#allocation3 + $0x14]]
        %v1268 = vstv %s1267
        %v1269 = vmul.f32 %v1268, %v1185
        %v1270 = vmul.f32 %v1268, %v1186
        %1273 = vrot.lane.b32.xlu0 %v1269, 126
        %v1274 = vpop.permute.xlu0 %1273
        %1275 = vrot.lane.b32.xlu0 %v1270, 126
        %v1276 = vpop.permute.xlu0 %1275
        %v1279 = vadd.f32 %v1223, %v1274
        %v1280 = vadd.f32 %v1224, %v1276
        %s1281 = sld [smem:[#allocation3 + $0x2f]]
        %v1282 = vstv %s1281
        %v1283 = vmul.f32 %v1282, %v1185
        %v1284 = vmul.f32 %v1282, %v1186
        %1287 = vrot.lane.b32.xlu0 %v1283, 126
        %v1288 = vpop.permute.xlu0 %1287
        %1289 = vrot.lane.b32.xlu0 %v1284, 126
        %v1290 = vpop.permute.xlu0 %1289
        %v1293 = vadd.f32 %v1237, %v1288
        %v1294 = vadd.f32 %v1238, %v1290
        %s1295 = sld [smem:[#allocation3 + $0x4a]]
        %v1296 = vstv %s1295
        %v1297 = vmul.f32 %v1296, %v1185
        %v1298 = vmul.f32 %v1296, %v1186
        %1301 = vrot.lane.b32.xlu0 %v1297, 126
        %v1302 = vpop.permute.xlu0 %1301
        %1303 = vrot.lane.b32.xlu0 %v1298, 126
        %v1304 = vpop.permute.xlu0 %1303
        %v1307 = vadd.f32 %v1251, %v1302
        %v1308 = vadd.f32 %v1252, %v1304
        %s1309 = sld [smem:[#allocation3 + $0x65]]
        %v1310 = vstv %s1309
        %v1311 = vmul.f32 %v1310, %v1185
        %v1312 = vmul.f32 %v1310, %v1186
        %1315 = vrot.lane.b32.xlu0 %v1311, 126
        %v1316 = vpop.permute.xlu0 %1315
        %1317 = vrot.lane.b32.xlu0 %v1312, 126
        %v1318 = vpop.permute.xlu0 %1317
        %v1321 = vadd.f32 %v1265, %v1316
        %v1322 = vadd.f32 %v1266, %v1318
        %v1323 = vld [vmem:[%s1184 + $0x1] sm:$0xff]
        %v1324 = vld [vmem:[%s1184 + $0x9] sm:$0xff]
        %s1325 = sld [smem:[#allocation3 + $0x15]]
        %v1326 = vstv %s1325
        %v1327 = vmul.f32 %v1326, %v1323
        %v1328 = vmul.f32 %v1326, %v1324
        %v1329 = vadd.f32 %v1279, %v1327
        %v1330 = vadd.f32 %v1280, %v1328
        %s1331 = sld [smem:[#allocation3 + $0x30]]
        %v1332 = vstv %s1331
        %v1333 = vmul.f32 %v1332, %v1323
        %v1334 = vmul.f32 %v1332, %v1324
        %v1335 = vadd.f32 %v1293, %v1333
        %v1336 = vadd.f32 %v1294, %v1334
        %s1337 = sld [smem:[#allocation3 + $0x4b]]
        %v1338 = vstv %s1337
        %v1339 = vmul.f32 %v1338, %v1323
        %v1340 = vmul.f32 %v1338, %v1324
        %v1341 = vadd.f32 %v1307, %v1339
        %v1342 = vadd.f32 %v1308, %v1340
        %s1343 = sld [smem:[#allocation3 + $0x66]]
        %v1344 = vstv %s1343
        %v1345 = vmul.f32 %v1344, %v1323
        %v1346 = vmul.f32 %v1344, %v1324
        %v1347 = vadd.f32 %v1321, %v1345
        %v1348 = vadd.f32 %v1322, %v1346
        %s1349 = sld [smem:[#allocation3 + $0x16]]
        %v1350 = vstv %s1349
        %v1351 = vmul.f32 %v1350, %v1323
        %v1352 = vmul.f32 %v1350, %v1324
        %1355 = vrot.lane.b32.xlu0 %v1351, 127
        %v1356 = vpop.permute.xlu0 %1355
        %1357 = vrot.lane.b32.xlu0 %v1352, 127
        %v1358 = vpop.permute.xlu0 %1357
        %v1361 = vadd.f32 %v1329, %v1356
        %v1362 = vadd.f32 %v1330, %v1358
        %s1363 = sld [smem:[#allocation3 + $0x31]]
        %v1364 = vstv %s1363
        %v1365 = vmul.f32 %v1364, %v1323
        %v1366 = vmul.f32 %v1364, %v1324
        %1369 = vrot.lane.b32.xlu0 %v1365, 127
        %v1370 = vpop.permute.xlu0 %1369
        %1371 = vrot.lane.b32.xlu0 %v1366, 127
        %v1372 = vpop.permute.xlu0 %1371
        %v1375 = vadd.f32 %v1335, %v1370
        %v1376 = vadd.f32 %v1336, %v1372
        %s1377 = sld [smem:[#allocation3 + $0x4c]]
        %v1378 = vstv %s1377
        %v1379 = vmul.f32 %v1378, %v1323
        %v1380 = vmul.f32 %v1378, %v1324
        %1383 = vrot.lane.b32.xlu0 %v1379, 127
        %v1384 = vpop.permute.xlu0 %1383
        %1385 = vrot.lane.b32.xlu0 %v1380, 127
        %v1386 = vpop.permute.xlu0 %1385
        %v1389 = vadd.f32 %v1341, %v1384
        %v1390 = vadd.f32 %v1342, %v1386
        %s1391 = sld [smem:[#allocation3 + $0x67]]
        %v1392 = vstv %s1391
        %v1393 = vmul.f32 %v1392, %v1323
        %v1394 = vmul.f32 %v1392, %v1324
        %1397 = vrot.lane.b32.xlu0 %v1393, 127
        %v1398 = vpop.permute.xlu0 %1397
        %1399 = vrot.lane.b32.xlu0 %v1394, 127
        %v1400 = vpop.permute.xlu0 %1399
        %v1403 = vadd.f32 %v1347, %v1398
        %v1404 = vadd.f32 %v1348, %v1400
        %s1405 = sld [smem:[#allocation3 + $0x17]]
        %v1406 = vstv %s1405
        %v1407 = vmul.f32 %v1406, %v1323
        %v1408 = vmul.f32 %v1406, %v1324
        %1411 = vrot.lane.b32.xlu0 %v1407, 126
        %v1412 = vpop.permute.xlu0 %1411
        %1413 = vrot.lane.b32.xlu0 %v1408, 126
        %v1414 = vpop.permute.xlu0 %1413
        %v1417 = vadd.f32 %v1361, %v1412
        %v1418 = vadd.f32 %v1362, %v1414
        %s1419 = sld [smem:[#allocation3 + $0x32]]
        %v1420 = vstv %s1419
        %v1421 = vmul.f32 %v1420, %v1323
        %v1422 = vmul.f32 %v1420, %v1324
        %1425 = vrot.lane.b32.xlu0 %v1421, 126
        %v1426 = vpop.permute.xlu0 %1425
        %1427 = vrot.lane.b32.xlu0 %v1422, 126
        %v1428 = vpop.permute.xlu0 %1427
        %v1431 = vadd.f32 %v1375, %v1426
        %v1432 = vadd.f32 %v1376, %v1428
        %s1433 = sld [smem:[#allocation3 + $0x4d]]
        %v1434 = vstv %s1433
        %v1435 = vmul.f32 %v1434, %v1323
        %v1436 = vmul.f32 %v1434, %v1324
        %1439 = vrot.lane.b32.xlu0 %v1435, 126
        %v1440 = vpop.permute.xlu0 %1439
        %1441 = vrot.lane.b32.xlu0 %v1436, 126
        %v1442 = vpop.permute.xlu0 %1441
        %v1445 = vadd.f32 %v1389, %v1440
        %v1446 = vadd.f32 %v1390, %v1442
        %s1447 = sld [smem:[#allocation3 + $0x68]]
        %v1448 = vstv %s1447
        %v1449 = vmul.f32 %v1448, %v1323
        %v1450 = vmul.f32 %v1448, %v1324
        %1453 = vrot.lane.b32.xlu0 %v1449, 126
        %v1454 = vpop.permute.xlu0 %1453
        %1455 = vrot.lane.b32.xlu0 %v1450, 126
        %v1456 = vpop.permute.xlu0 %1455
        %v1459 = vadd.f32 %v1403, %v1454
        %v1460 = vadd.f32 %v1404, %v1456
        %v1461 = vld [vmem:[%s1184 + $0x2] sm:$0xff]
        %v1462 = vld [vmem:[%s1184 + $0xa] sm:$0xff]
        %s1463 = sld [smem:[#allocation3 + $0x18]]
        %v1464 = vstv %s1463
        %v1465 = vmul.f32 %v1464, %v1461
        %v1466 = vmul.f32 %v1464, %v1462
        %v1467 = vadd.f32 %v1417, %v1465
        %v1468 = vadd.f32 %v1418, %v1466
        %s1469 = sld [smem:[#allocation3 + $0x33]]
        %v1470 = vstv %s1469
        %v1471 = vmul.f32 %v1470, %v1461
        %v1472 = vmul.f32 %v1470, %v1462
        %v1473 = vadd.f32 %v1431, %v1471
        %v1474 = vadd.f32 %v1432, %v1472
        %s1475 = sld [smem:[#allocation3 + $0x4e]]
        %v1476 = vstv %s1475
        %v1477 = vmul.f32 %v1476, %v1461
        %v1478 = vmul.f32 %v1476, %v1462
        %v1479 = vadd.f32 %v1445, %v1477
        %v1480 = vadd.f32 %v1446, %v1478
        %s1481 = sld [smem:[#allocation3 + $0x69]]
        %v1482 = vstv %s1481
        %v1483 = vmul.f32 %v1482, %v1461
        %v1484 = vmul.f32 %v1482, %v1462
        %v1485 = vadd.f32 %v1459, %v1483
        %v1486 = vadd.f32 %v1460, %v1484
        %s1487 = sld [smem:[#allocation3 + $0x19]]
        %v1488 = vstv %s1487
        %v1489 = vmul.f32 %v1488, %v1461
        %v1490 = vmul.f32 %v1488, %v1462
        %1493 = vrot.lane.b32.xlu0 %v1489, 127
        %v1494 = vpop.permute.xlu0 %1493
        %1495 = vrot.lane.b32.xlu0 %v1490, 127
        %v1496 = vpop.permute.xlu0 %1495
        %v1499 = vadd.f32 %v1467, %v1494
        %v1500 = vadd.f32 %v1468, %v1496
        %s1501 = sld [smem:[#allocation3 + $0x34]]
        %v1502 = vstv %s1501
        %v1503 = vmul.f32 %v1502, %v1461
        %v1504 = vmul.f32 %v1502, %v1462
        %1507 = vrot.lane.b32.xlu0 %v1503, 127
        %v1508 = vpop.permute.xlu0 %1507
        %1509 = vrot.lane.b32.xlu0 %v1504, 127
        %v1510 = vpop.permute.xlu0 %1509
        %v1513 = vadd.f32 %v1473, %v1508
        %v1514 = vadd.f32 %v1474, %v1510
        %s1515 = sld [smem:[#allocation3 + $0x4f]]
        %v1516 = vstv %s1515
        %v1517 = vmul.f32 %v1516, %v1461
        %v1518 = vmul.f32 %v1516, %v1462
        %1521 = vrot.lane.b32.xlu0 %v1517, 127
        %v1522 = vpop.permute.xlu0 %1521
        %1523 = vrot.lane.b32.xlu0 %v1518, 127
        %v1524 = vpop.permute.xlu0 %1523
        %v1527 = vadd.f32 %v1479, %v1522
        %v1528 = vadd.f32 %v1480, %v1524
        %s1529 = sld [smem:[#allocation3 + $0x6a]]
        %v1530 = vstv %s1529
        %v1531 = vmul.f32 %v1530, %v1461
        %v1532 = vmul.f32 %v1530, %v1462
        %1535 = vrot.lane.b32.xlu0 %v1531, 127
        %v1536 = vpop.permute.xlu0 %1535
        %1537 = vrot.lane.b32.xlu0 %v1532, 127
        %v1538 = vpop.permute.xlu0 %1537
        %v1541 = vadd.f32 %v1485, %v1536
        %v1542 = vadd.f32 %v1486, %v1538
        %s1543 = sld [smem:[#allocation3 + $0x1a]]
        %v1544 = vstv %s1543
        %v1545 = vmul.f32 %v1544, %v1461
        %v1546 = vmul.f32 %v1544, %v1462
        %1549 = vrot.lane.b32.xlu0 %v1545, 126
        %v1550 = vpop.permute.xlu0 %1549
        %1551 = vrot.lane.b32.xlu0 %v1546, 126
        %v1552 = vpop.permute.xlu0 %1551
        %v1555 = vadd.f32 %v1499, %v1550
        %v1556 = vadd.f32 %v1500, %v1552
        %s1557 = sld [smem:[#allocation3 + $0x35]]
        %v1558 = vstv %s1557
        %v1559 = vmul.f32 %v1558, %v1461
        %v1560 = vmul.f32 %v1558, %v1462
        %1563 = vrot.lane.b32.xlu0 %v1559, 126
        %v1564 = vpop.permute.xlu0 %1563
        %1565 = vrot.lane.b32.xlu0 %v1560, 126
        %v1566 = vpop.permute.xlu0 %1565
        %v1569 = vadd.f32 %v1513, %v1564
        %v1570 = vadd.f32 %v1514, %v1566
        %s1571 = sld [smem:[#allocation3 + $0x50]]
        %v1572 = vstv %s1571
        %v1573 = vmul.f32 %v1572, %v1461
        %v1574 = vmul.f32 %v1572, %v1462
        %1577 = vrot.lane.b32.xlu0 %v1573, 126
        %v1578 = vpop.permute.xlu0 %1577
        %1579 = vrot.lane.b32.xlu0 %v1574, 126
        %v1580 = vpop.permute.xlu0 %1579
        %v1583 = vadd.f32 %v1527, %v1578
        %v1584 = vadd.f32 %v1528, %v1580
        %s1585 = sld [smem:[#allocation3 + $0x6b]]
        %v1586 = vstv %s1585
        %v1587 = vmul.f32 %v1586, %v1461
        %v1588 = vmul.f32 %v1586, %v1462
        %1591 = vrot.lane.b32.xlu0 %v1587, 126
        %v1592 = vpop.permute.xlu0 %1591
        %1593 = vrot.lane.b32.xlu0 %v1588, 126
        %v1594 = vpop.permute.xlu0 %1593
        %v1597 = vadd.f32 %v1541, %v1592
        %v1598 = vadd.f32 %v1542, %v1594
        %s1599 = sld [smem:[#allocation9]]
        %s1600 = sld [smem:[#allocation9 + $0x1]]
        %s1601 = sld [smem:[#allocation6]]
        %v1602 = vstv %s1601
        %v1603 = vmul.f32 %v1555, %v1602
        %v1604 = vmul.f32 %v1556, %v1602
        %s1605 = sld [smem:[#allocation8]]
        %v1606 = vstv %s1605
        %v1607 = vadd.f32 %v1603, %v1606
        %v1608 = vadd.f32 %v1604, %v1606
        %v1609 = vmax.f32 %v1607, 0.0
        %v1610 = vmax.f32 %v1608, 0.0
        %1613 = vrot.lane.b32.xlu0 %v1609, 127
        %v1614 = vpop.permute.xlu0 %1613
        %1615 = vrot.lane.b32.xlu0 %v1610, 127
        %v1616 = vpop.permute.xlu0 %1615
        %v1619 = vmax.f32 %v1609, %v1614
        %v1620 = vmax.f32 %v1610, %v1616
        %vm1623 = vcmask 1046528
        %v1624 = vrot.slane %v1619, 1
        %v1625 = vrot.slane %v1620, 1
        %v1626 = vsel %vm1623, %v1624, %v1625
        %v1629 = vmax.f32 %v1619, %v1626
        %v1630 = vmax.f32 %v1620, %v1625
        %v1631 = vld [vmem:[%s4] sm:$0xff]
        %v1632 = vld [vmem:[%s4 + $0x8] sm:$0x7f]
        %v1633 = vmul.f32 %v1631, %v1629
        %v1634 = vmul.f32 %v1632, %v1630
        %vm1635 = vcmask 121856
        %v1636 = vsel %vm1635, %v1633, 0.0
        %vm1637 = vcmask 120832
        %v1638 = vsel %vm1637, %v1634, 0.0
        %v1639 = vadd.f32 %v1636, %v1638
        %1640 = vadd.xlane.f32.xlu0 %v1639
        %v1641 = vpop.xlane.xlu0 %1640
        %v1642 = vrot.slane %v1641, 4
        %v1643 = vadd.f32 %v1641, %v1642
        %v1644 = vrot.slane %v1643, 2
        %v1645 = vadd.f32 %v1643, %v1644
        %v1646 = vrot.slane %v1645, 1
        %v1647 = vadd.f32 %v1645, %v1646
        %s1648 = vtos %v1647
        %s1649 = sadd.f32 %s1599, %s1648
        %s1650 = scalar_lea.vmem %s4, 64
        %v1651 = vld [vmem:[%s1650] sm:$0xff]
        %v1652 = vld [vmem:[%s1650 + $0x8] sm:$0x7f]
        %v1653 = vmul.f32 %v1651, %v1629
        %v1654 = vmul.f32 %v1652, %v1630
        %v1655 = vsel %vm1635, %v1653, 0.0
        %v1656 = vsel %vm1637, %v1654, 0.0
        %v1657 = vadd.f32 %v1655, %v1656
        %1658 = vadd.xlane.f32.xlu0 %v1657
        %v1659 = vpop.xlane.xlu0 %1658
        %v1660 = vrot.slane %v1659, 4
        %v1661 = vadd.f32 %v1659, %v1660
        %v1662 = vrot.slane %v1661, 2
        %v1663 = vadd.f32 %v1661, %v1662
        %v1664 = vrot.slane %v1663, 1
        %v1665 = vadd.f32 %v1663, %v1664
        %s1666 = vtos %v1665
        %s1667 = sadd.f32 %s1600, %s1666
        %s1668 = sld [smem:[#allocation6 + $0x1]]
        %v1669 = vstv %s1668
        %v1670 = vmul.f32 %v1569, %v1669
        %v1671 = vmul.f32 %v1570, %v1669
        %s1672 = sld [smem:[#allocation8 + $0x1]]
        %v1673 = vstv %s1672
        %v1674 = vadd.f32 %v1670, %v1673
        %v1675 = vadd.f32 %v1671, %v1673
        %v1676 = vmax.f32 %v1674, 0.0
        %v1677 = vmax.f32 %v1675, 0.0
        %1680 = vrot.lane.b32.xlu0 %v1676, 127
        %v1681 = vpop.permute.xlu0 %1680
        %1682 = vrot.lane.b32.xlu0 %v1677, 127
        %v1683 = vpop.permute.xlu0 %1682
        %v1686 = vmax.f32 %v1676, %v1681
        %v1687 = vmax.f32 %v1677, %v1683
        %v1690 = vrot.slane %v1686, 1
        %v1691 = vrot.slane %v1687, 1
        %v1692 = vsel %vm1623, %v1690, %v1691
        %v1695 = vmax.f32 %v1686, %v1692
        %v1696 = vmax.f32 %v1687, %v1691
        %s1697 = scalar_lea.vmem %s4, 16
        %v1698 = vld [vmem:[%s1697] sm:$0xff]
        %v1699 = vld [vmem:[%s1697 + $0x8] sm:$0x7f]
        %v1700 = vmul.f32 %v1698, %v1695
        %v1701 = vmul.f32 %v1699, %v1696
        %v1702 = vsel %vm1635, %v1700, 0.0
        %v1703 = vsel %vm1637, %v1701, 0.0
        %v1704 = vadd.f32 %v1702, %v1703
        %1705 = vadd.xlane.f32.xlu0 %v1704
        %v1706 = vpop.xlane.xlu0 %1705
        %v1707 = vrot.slane %v1706, 4
        %v1708 = vadd.f32 %v1706, %v1707
        %v1709 = vrot.slane %v1708, 2
        %v1710 = vadd.f32 %v1708, %v1709
        %v1711 = vrot.slane %v1710, 1
        %v1712 = vadd.f32 %v1710, %v1711
        %s1713 = vtos %v1712
        %s1714 = sadd.f32 %s1649, %s1713
        %s1715 = scalar_lea.vmem %s4, 80
        %v1716 = vld [vmem:[%s1715] sm:$0xff]
        %v1717 = vld [vmem:[%s1715 + $0x8] sm:$0x7f]
        %v1718 = vmul.f32 %v1716, %v1695
        %v1719 = vmul.f32 %v1717, %v1696
        %v1720 = vsel %vm1635, %v1718, 0.0
        %v1721 = vsel %vm1637, %v1719, 0.0
        %v1722 = vadd.f32 %v1720, %v1721
        %1723 = vadd.xlane.f32.xlu0 %v1722
        %v1724 = vpop.xlane.xlu0 %1723
        %v1725 = vrot.slane %v1724, 4
        %v1726 = vadd.f32 %v1724, %v1725
        %v1727 = vrot.slane %v1726, 2
        %v1728 = vadd.f32 %v1726, %v1727
        %v1729 = vrot.slane %v1728, 1
        %v1730 = vadd.f32 %v1728, %v1729
        %s1731 = vtos %v1730
        %s1732 = sadd.f32 %s1667, %s1731
        %s1733 = sld [smem:[#allocation6 + $0x2]]
        %v1734 = vstv %s1733
        %v1735 = vmul.f32 %v1583, %v1734
        %v1736 = vmul.f32 %v1584, %v1734
        %s1737 = sld [smem:[#allocation8 + $0x2]]
        %v1738 = vstv %s1737
        %v1739 = vadd.f32 %v1735, %v1738
        %v1740 = vadd.f32 %v1736, %v1738
        %v1741 = vmax.f32 %v1739, 0.0
        %v1742 = vmax.f32 %v1740, 0.0
        %1745 = vrot.lane.b32.xlu0 %v1741, 127
        %v1746 = vpop.permute.xlu0 %1745
        %1747 = vrot.lane.b32.xlu0 %v1742, 127
        %v1748 = vpop.permute.xlu0 %1747
        %v1751 = vmax.f32 %v1741, %v1746
        %v1752 = vmax.f32 %v1742, %v1748
        %v1755 = vrot.slane %v1751, 1
        %v1756 = vrot.slane %v1752, 1
        %v1757 = vsel %vm1623, %v1755, %v1756
        %v1760 = vmax.f32 %v1751, %v1757
        %v1761 = vmax.f32 %v1752, %v1756
        %s1762 = scalar_lea.vmem %s4, 32
        %v1763 = vld [vmem:[%s1762] sm:$0xff]
        %v1764 = vld [vmem:[%s1762 + $0x8] sm:$0x7f]
        %v1765 = vmul.f32 %v1763, %v1760
        %v1766 = vmul.f32 %v1764, %v1761
        %v1767 = vsel %vm1635, %v1765, 0.0
        %v1768 = vsel %vm1637, %v1766, 0.0
        %v1769 = vadd.f32 %v1767, %v1768
        %1770 = vadd.xlane.f32.xlu0 %v1769
        %v1771 = vpop.xlane.xlu0 %1770
        %v1772 = vrot.slane %v1771, 4
        %v1773 = vadd.f32 %v1771, %v1772
        %v1774 = vrot.slane %v1773, 2
        %v1775 = vadd.f32 %v1773, %v1774
        %v1776 = vrot.slane %v1775, 1
        %v1777 = vadd.f32 %v1775, %v1776
        %s1778 = vtos %v1777
        %s1779 = sadd.f32 %s1714, %s1778
        %s1780 = scalar_lea.vmem %s4, 96
        %v1781 = vld [vmem:[%s1780] sm:$0xff]
        %v1782 = vld [vmem:[%s1780 + $0x8] sm:$0x7f]
        %v1783 = vmul.f32 %v1781, %v1760
        %v1784 = vmul.f32 %v1782, %v1761
        %v1785 = vsel %vm1635, %v1783, 0.0
        %v1786 = vsel %vm1637, %v1784, 0.0
        %v1787 = vadd.f32 %v1785, %v1786
        %1788 = vadd.xlane.f32.xlu0 %v1787
        %v1789 = vpop.xlane.xlu0 %1788
        %v1790 = vrot.slane %v1789, 4
        %v1791 = vadd.f32 %v1789, %v1790
        %v1792 = vrot.slane %v1791, 2
        %v1793 = vadd.f32 %v1791, %v1792
        %v1794 = vrot.slane %v1793, 1
        %v1795 = vadd.f32 %v1793, %v1794
        %s1796 = vtos %v1795
        %s1797 = sadd.f32 %s1732, %s1796
        %s1798 = sld [smem:[#allocation6 + $0x3]]
        %v1799 = vstv %s1798
        %v1800 = vmul.f32 %v1597, %v1799
        %v1801 = vmul.f32 %v1598, %v1799
        %s1802 = sld [smem:[#allocation8 + $0x3]]
        %v1803 = vstv %s1802
        %v1804 = vadd.f32 %v1800, %v1803
        %v1805 = vadd.f32 %v1801, %v1803
        %v1806 = vmax.f32 %v1804, 0.0
        %v1807 = vmax.f32 %v1805, 0.0
        %1810 = vrot.lane.b32.xlu0 %v1806, 127
        %v1811 = vpop.permute.xlu0 %1810
        %1812 = vrot.lane.b32.xlu0 %v1807, 127
        %v1813 = vpop.permute.xlu0 %1812
        %v1816 = vmax.f32 %v1806, %v1811
        %v1817 = vmax.f32 %v1807, %v1813
        %v1820 = vrot.slane %v1816, 1
        %v1821 = vrot.slane %v1817, 1
        %v1822 = vsel %vm1623, %v1820, %v1821
        %v1825 = vmax.f32 %v1816, %v1822
        %v1826 = vmax.f32 %v1817, %v1821
        %s1827 = scalar_lea.vmem %s4, 48
        %v1828 = vld [vmem:[%s1827] sm:$0xff]
        %v1829 = vld [vmem:[%s1827 + $0x8] sm:$0x7f]
        %v1830 = vmul.f32 %v1828, %v1825
        %v1831 = vmul.f32 %v1829, %v1826
        %v1832 = vsel %vm1635, %v1830, 0.0
        %v1833 = vsel %vm1637, %v1831, 0.0
        %v1834 = vadd.f32 %v1832, %v1833
        %1835 = vadd.xlane.f32.xlu0 %v1834
        %v1836 = vpop.xlane.xlu0 %1835
        %v1837 = vrot.slane %v1836, 4
        %v1838 = vadd.f32 %v1836, %v1837
        %v1839 = vrot.slane %v1838, 2
        %v1840 = vadd.f32 %v1838, %v1839
        %v1841 = vrot.slane %v1840, 1
        %v1842 = vadd.f32 %v1840, %v1841
        %s1843 = vtos %v1842
        %s1844 = sadd.f32 %s1779, %s1843
        %s1845 = scalar_lea.vmem %s4, 112
        %v1846 = vld [vmem:[%s1845] sm:$0xff]
        %v1847 = vld [vmem:[%s1845 + $0x8] sm:$0x7f]
        %v1848 = vmul.f32 %v1846, %v1825
        %v1849 = vmul.f32 %v1847, %v1826
        %v1850 = vsel %vm1635, %v1848, 0.0
        %v1851 = vsel %vm1637, %v1849, 0.0
        %v1852 = vadd.f32 %v1850, %v1851
        %1853 = vadd.xlane.f32.xlu0 %v1852
        %v1854 = vpop.xlane.xlu0 %1853
        %v1855 = vrot.slane %v1854, 4
        %v1856 = vadd.f32 %v1854, %v1855
        %v1857 = vrot.slane %v1856, 2
        %v1858 = vadd.f32 %v1856, %v1857
        %v1859 = vrot.slane %v1858, 1
        %v1860 = vadd.f32 %v1858, %v1859
        %s1861 = vtos %v1860
        %s1862 = sadd.f32 %s1797, %s1861
        %v1863 = vlaneseq
        %v1864 = vand.u32 %v1863, 127
        %vm1865 = vcmp.eq.s32.totalorder %v1864, 0
        %v1866 = vstv %s1844
        %v1867 = vsel %vm1865, %v1866, 0.0
        %vm1868 = vcmp.eq.s32.totalorder %v1864, 1
        %v1869 = vstv %s1862
        %v1870 = vsel %vm1868, %v1869, %v1867
        %1871 = vst [vmem:[%s295] sm:$0x1] %v1870
        %s1872 = sand.u32 %s162, 1
        %s1873 = scalar_lea.sflag [#allocation4], %s1872
        %s1874 = sand.u32 %s162, 1
        %s1875 = scalar_lea.vmem [#allocation11], %s1874
        // Predicated region
        $region61: #{one_conv_layer_net.1} parent=43 // pred_check
          %p1876 = pneg %p172
        $region62: #{one_conv_layer_net.1} parent=43 // pred_check_branch
          %1878 = sbr.rel (%p1876) target = $region64
        $region63: #{one_conv_layer_net.1} parent=43 // pred_region
          %1880 = vsyncadd %s1873, 0
          %s1881 = scalar_lea.hbm %s6, %s23
          %s1883 = sshll.u32 %s1875, 4
          %s1884 = int_to_ptr.vmem [resolvable:$true] %s1883
          %s1885 = sshll.u32 %s1881, 4
          %s1886 = int_to_ptr.hbm [resolvable:$true] %s1885
          %1888 = dma.vmem_to_hbm [thread:$0]  %s1884, 16, %s1886, %s1873
        $region64: #{one_conv_layer_net.1} parent=43 // pred_fallthru
          _
      $region44: #{one_conv_layer_net.1} parent=5 // pred_fallthru
        _
      %p1889 = scmp.le.s32.totalorder 2, %s18
      // Predicated region
      $region65: #{one_conv_layer_net.1} parent=5 // pred_check
        %p1890 = pneg %p1889
      $region66: #{one_conv_layer_net.1} parent=5 // pred_check_branch
        %1892 = sbr.rel (%p1890) target = $region68
      $region67: #{one_conv_layer_net.1} parent=5 // pred_region
        %s1893 = ssub.s32 %s18, 2
        // Predicated region
        $region69: #{one_conv_layer_net.1} parent=67 // pred_check
          %p1894 = pneg %p178
        $region70: #{one_conv_layer_net.1} parent=67 // pred_check_branch
          %1896 = sbr.rel (%p1894) target = $region72
        $region71: #{one_conv_layer_net.1} parent=67 // pred_region
          %s1897 = sand.u32 %s163, 1
          %s1898 = scalar_lea.sflag [#allocation4], %s1897
          %s1899 = sand.u32 %s163, 1
          %s1900 = scalar_lea.vmem [#allocation11], %s1899
          %1902 = dma.done %s1898, 16
        $region72: #{one_conv_layer_net.1} parent=67 // pred_fallthru
          _
      $region68: #{one_conv_layer_net.1} parent=5 // pred_fallthru
        _
    $region6: #{one_conv_layer_net.1} parent=1 // loop_footer
      %s22 = sadd.s32 1, %s18
    $region7: #{one_conv_layer_net.1} parent=1 // loop_footer_branch
      %17 = sbr.rel target = $region3
    $region8: #{one_conv_layer_net.1} parent=1 // loop_exit
      _
    %1903 = vsyncpa [#allocation4], 1
    %s1904 = scalar_lea.sflag [#allocation4], 1
    %1905 = vsyncpa %s1904, 1
    %1906 = vsyncpa [#allocation5], 1
    %s1907 = scalar_lea.sflag [#allocation5], 1
    %1908 = vsyncpa %s1907, 1
    %1909 = vsyncpa [#allocation7], 1
    %1910 = vsyncpa [#allocation10], 1

</llo_original>
